<compile_context>
chip_gen: v7x
topology: tpu7x:2x2x1
jax: 0.10.0
libtpu: 0.0.40
codegen_flags: <defaults>
</compile_context>

<pallas_src>
import functools

import jax
import jax.numpy as jnp
import numpy as np
from jax import lax
from jax.experimental import pallas as pl
from jax.experimental.pallas import tpu as pltpu


# ---------------------------------------------------------------------------
# blob layouts (shared by the host-side packer and the kernel)
# ---------------------------------------------------------------------------
def blob_offsets(C, H, M):
    def build(items, align):
        off, r = {}, 0
        for name, rows in items:
            off[name] = r
            r += rows
            r = ((r + align - 1) // align) * align
        off["_rows"] = max(r, align)
        return off

    # f32 blob: width-1 column vectors stacked vertically (stored in column 0 of width 8)
    f_off = build([("b1", H), ("b2f", 2 * C), ("w1s", M), ("hb1", M),
                   ("wscs", 8), ("bh", 8)], 8)
    # bf16 blob: pre-transposed weight matrices stacked vertically
    b_off = build([("w1", H), ("w2f", 2 * C), ("hw1f", M),
                   ("hw2", 8), ("hwscf", 8)], 16)
    b_off["_width"] = max(3, H, C, M)
    return f_off, b_off


# ---------------------------------------------------------------------------
# the Pallas kernel  (grid = (batch, N // TQ))
# ---------------------------------------------------------------------------
def seg_kernel(N, C, H, M, TQ, TE,
               xs_ref, xe_ref, sf_ref, sb_ref, ef_ref, eb_ref,
               out_s_ref, out_e_ref,
               fw_e_ref, cacc_ref):
    f32, bf16 = jnp.float32, jnp.bfloat16
    f_off, b_off = blob_offsets(C, H, M)
    t = pl.program_id(1)
    NE = N // TE                                   # static number of end-point chunks

    # TODO(synk): the real PointNeXt encoder (set-abstraction stages built from an external
    # EasyConfig) is unspecified here; a deterministic per-point MLP of the same output
    # width C stands in for it (both branches).
    def backbone(xyz_bf, wref, fref):
        w1 = wref[b_off["w1"]:b_off["w1"] + H, 0:3]                    # (H, 3) bf16
        b1 = fref[f_off["b1"]:f_off["b1"] + H, 0:1]                    # (H, 1) f32
        h = jnp.maximum(jnp.dot(w1, xyz_bf, preferred_element_type=f32) + b1, 0.0)
        w2f = wref[b_off["w2f"]:b_off["w2f"] + 2 * C, 0:H]             # (2C, H) bf16 (ww fused)
        b2f = fref[f_off["b2f"]:f_off["b2f"] + 2 * C, 0:1]             # (2C, 1)
        fw = jnp.dot(w2f, h.astype(bf16), preferred_element_type=f32) + b2f
        return fw.astype(bf16)                                         # (2C, points) = [feat ; w]

    # TODO(synk): MLP_Res internals are not given; implemented as
    # out = W2 @ relu(W1 @ x + b1) + Wsc @ x + bsc with x = [feat ; source].
    def head(feat_bf, src, wref, fref, n_valid):
        w1f = wref[b_off["hw1f"]:b_off["hw1f"] + M, 0:C]               # (M, C)
        w1s = fref[f_off["w1s"]:f_off["w1s"] + M, 0:1]                 # (M, 1)
        b1 = fref[f_off["hb1"]:f_off["hb1"] + M, 0:1]                  # (M, 1)
        h = jnp.maximum(jnp.dot(w1f, feat_bf, preferred_element_type=f32)
                        + w1s * src + b1, 0.0)                         # (M, P)
        w2 = wref[b_off["hw2"]:b_off["hw2"] + 8, 0:M]                  # (8, M), rows>=n_valid zero
        wscf = wref[b_off["hwscf"]:b_off["hwscf"] + 8, 0:C]            # (8, C)
        wscs = fref[f_off["wscs"]:f_off["wscs"] + 8, 0:1]              # (8, 1)
        bh = fref[f_off["bh"]:f_off["bh"] + 8, 0:1]                    # (8, 1) = b2 + bsc
        logits = (jnp.dot(w2, h.astype(bf16), preferred_element_type=f32)
                  + jnp.dot(wscf, feat_bf, preferred_element_type=f32)
                  + wscs * src + bh)                                   # (8, P)
        valid = lax.broadcasted_iota(jnp.int32, (8, 1), 0) < n_valid
        m = jnp.max(jnp.where(valid, logits, -jnp.inf), axis=0, keepdims=True)
        z = logits - m
        den = jnp.sum(jnp.where(valid, jnp.exp(z), 0.0), axis=0, keepdims=True)
        return z - jnp.log(den)                                        # rows>=n_valid are junk

    # ---- once per batch element: end backbone + zero the source_end accumulator ----------
    @pl.when(t == 0)
    def _init():
        fw_e_ref[...] = backbone(xe_ref[0].astype(bf16), eb_ref, ef_ref)   # (2C, N)
        cacc_ref[...] = jnp.zeros_like(cacc_ref)

    # ---- every step: start backbone for this stripe of TQ start points -------------------
    fw_s = backbone(xs_ref[0].astype(bf16), sb_ref, sf_ref)            # (2C, TQ) bf16
    feat_s = fw_s[0:C, :]                                              # (C, TQ)
    w_s = fw_s[C:2 * C, :]                                             # (C, TQ)

    # ---- streamed Gram: start stripe (sublanes) x end chunks (lanes), fused reductions ---
    racc = jnp.zeros((TQ, 128), f32)                                   # source_start partials
    for e in range(NE):
        e0 = e * TE
        w_e = fw_e_ref[C:2 * C, e0:e0 + TE]                            # (C, TE) bf16
        blk = lax.dot_general(w_s, w_e, (((0,), (0,)), ((), ())),
                              preferred_element_type=f32)              # (TQ, TE)
        blk = jnp.maximum(blk, 0.0)
        # source_end partial: collapse the TQ start rows onto 8 sublanes (pure VPU adds)
        cpart = blk[0:8, :]
        for g in range(1, TQ // 8):
            cpart = cpart + blk[g * 8:(g + 1) * 8, :]
        cacc_ref[:, e0:e0 + TE] += cpart
        # source_start: accumulate 128-lane chunks (pure VPU adds)
        for l in range(TE // 128):
            racc = racc + blk[:, l * 128:(l + 1) * 128]
    # lane-dense (1, TQ) row sums via one tiny f32 ones-matmul (no (TQ,1)->(1,TQ) relayout)
    rsum = lax.dot_general(jnp.ones((8, 128), f32), racc,
                           (((1,), (1,)), ((), ())), preferred_element_type=f32)   # (8, TQ)
    src_s = rsum[0:1, :]                                               # (1, TQ)

    # ---- start head for this stripe (lane-dense (8, TQ) output block) --------------------
    out_s_ref[0] = head(feat_s, src_s, sb_ref, sf_ref, 2)

    # ---- last stripe: collapse source_end and run the end head, chunked over points ------
    @pl.when(t == pl.num_programs(1) - 1)
    def _end():
        for e in range(NE):
            e0 = e * TE
            feat_e = fw_e_ref[0:C, e0:e0 + TE]                         # (C, TE) bf16
            src_e = jnp.sum(cacc_ref[:, e0:e0 + TE], axis=0, keepdims=True)   # (1, TE)
            out_e_ref[0, :, e0:e0 + TE] = head(feat_e, src_e, eb_ref, ef_ref, 3)


# ---------------------------------------------------------------------------
# host-side weight preparation (fold self.ww) and blob packing
# ---------------------------------------------------------------------------
def prepare_weights(p):
    def fuse_bb(w1, b1, w2, b2):
        return dict(
            w1=w1, b1=b1,
            w2f=jnp.concatenate([w2, w2 @ p["ww_w"]], axis=1),
            b2f=jnp.concatenate([b2, b2 @ p["ww_w"] + p["ww_b"]], axis=1))

    wstart = fuse_bb(p["sw1"], p["sb1"], p["sw2"], p["sb2"])
    wstart.update(h_w1f=p["ms_w1f"], h_w1s=p["ms_w1s"], h_b1=p["ms_b1"],
                  h_w2=p["ms_w2"], h_wscf=p["ms_wscf"], h_wscs=p["ms_wscs"],
                  h_bh=p["ms_b2"] + p["ms_bsc"])
    wend = fuse_bb(p["ew1"], p["eb1"], p["ew2"], p["eb2"])
    wend.update(h_w1f=p["me_w1f"], h_w1s=p["me_w1s"], h_b1=p["me_b1"],
                h_w2=p["me_w2"], h_wscf=p["me_wscf"], h_wscs=p["me_wscs"],
                h_bh=p["me_b2"] + p["me_bsc"])
    return wstart, wend


def pack_branch(wb, C, H, M):
    f32, bf16 = jnp.float32, jnp.bfloat16
    f_off, b_off = blob_offsets(C, H, M)

    def put(dst, off, mat):
        return dst.at[off:off + mat.shape[0], 0:mat.shape[1]].set(mat.astype(dst.dtype))

    fblob = jnp.zeros((f_off["_rows"], 8), f32)
    fblob = put(fblob, f_off["b1"], wb["b1"].T)            # (H, 1)
    fblob = put(fblob, f_off["b2f"], wb["b2f"].T)          # (2C, 1)
    fblob = put(fblob, f_off["w1s"], wb["h_w1s"].T)        # (M, 1)
    fblob = put(fblob, f_off["hb1"], wb["h_b1"].T)         # (M, 1)
    fblob = put(fblob, f_off["wscs"], wb["h_wscs"].T)      # (out, 1), rest of 8 rows zero
    fblob = put(fblob, f_off["bh"], wb["h_bh"].T)          # (out, 1)

    bblob = jnp.zeros((b_off["_rows"], b_off["_width"]), bf16)
    bblob = put(bblob, b_off["w1"], wb["w1"].T)            # (H, 3)
    bblob = put(bblob, b_off["w2f"], wb["w2f"].T)          # (2C, H)
    bblob = put(bblob, b_off["hw1f"], wb["h_w1f"].T)       # (M, C)
    bblob = put(bblob, b_off["hw2"], wb["h_w2"].T)         # (out, M), rest of 8 rows zero
    bblob = put(bblob, b_off["hwscf"], wb["h_wscf"].T)     # (out, C)
    return fblob, bblob


# ---------------------------------------------------------------------------
# wrapper
# ---------------------------------------------------------------------------
def seg_net_forward(pcs, params, num_points, feat_dim, bb_hidden, mlp_dim,
                    tile_q=128, tile_e=256):
    # tile_q: start-point stripe width (sweep 256 on v6e/v7x; keep 128 on v5e).
    # tile_e: end-point chunk width for the streamed Gram / end head (256-512).
    B = pcs.shape[0]
    N, C, H, M = num_points, feat_dim, bb_hidden, mlp_dim
    TQ, TE = min(tile_q, N), min(tile_e, N)
    assert pcs.shape == (B, 2 * N, 3)
    assert N % TQ == 0 and N % TE == 0 and TQ % 128 == 0 and TE % 128 == 0
    assert C % 16 == 0 and H % 16 == 0 and M % 16 == 0

    wstart, wend = prepare_weights(params)
    sf32, sb16 = pack_branch(wstart, C, H, M)
    ef32, eb16 = pack_branch(wend, C, H, M)

    pcs_t = jnp.transpose(pcs, (0, 2, 1))                  # (B, 3, 2N) channel-first
    xyz_s_t = pcs_t[:, :, :N]                              # (B, 3, N)
    xyz_e_t = pcs_t[:, :, N:]                              # (B, 3, N)

    out_shape = (jax.ShapeDtypeStruct((B, 8, N), jnp.float32),   # start logprobs, rows 0:2 valid
                 jax.ShapeDtypeStruct((B, 8, N), jnp.float32))   # end logprobs,   rows 0:3 valid

    out_start_t, out_end_t = pl.pallas_call(
        functools.partial(seg_kernel, N, C, H, M, TQ, TE),
        grid=(B, N // TQ),
        in_specs=[
            pl.BlockSpec((1, 3, TQ), lambda b, t: (b, 0, t)),      # start points, per stripe
            pl.BlockSpec((1, 3, N), lambda b, t: (b, 0, 0)),       # end points, resident per batch
            pl.BlockSpec(sf32.shape, lambda b, t: (0, 0)),
            pl.BlockSpec(sb16.shape, lambda b, t: (0, 0)),
            pl.BlockSpec(ef32.shape, lambda b, t: (0, 0)),
            pl.BlockSpec(eb16.shape, lambda b, t: (0, 0)),
        ],
        out_specs=(
            pl.BlockSpec((1, 8, TQ), lambda b, t: (b, 0, t)),      # lane-dense start output
            pl.BlockSpec((1, 8, N), lambda b, t: (b, 0, 0)),       # lane-dense end output
        ),
        out_shape=out_shape,
        scratch_shapes=[
            pltpu.VMEM((2 * C, N), jnp.bfloat16),    # end backbone [feat ; w], persists over stripes
            pltpu.VMEM((8, N), jnp.float32),         # source_end partial accumulator (8 sublanes)
        ],
        compiler_params=pltpu.CompilerParams(
            # Batch axis parallel (megacore on v7x); stripe axis carries accumulators.
            # TODO(synk): when B is commonly 1 on v7x, additionally split the stripe axis
            # across cores with per-core source_end partials combined outside.
            dimension_semantics=("parallel", "arbitrary"),
            # Working set is ~5-10 MiB at N=4096; 32 MiB keeps headroom on v7x (64 MiB physical).
            vmem_limit_bytes=32 * 1024 * 1024,
        ),
    )(xyz_s_t, xyz_e_t, sf32, sb16, ef32, eb16)

    seg_start = jnp.transpose(out_start_t[:, 0:2, :], (0, 2, 1))   # (B, N, 2) log-probs
    seg_end = jnp.transpose(out_end_t[:, 0:3, :], (0, 2, 1))       # (B, N, 3) log-probs
    return seg_start, seg_end


# ---------------------------------------------------------------------------
# deterministic synthetic parameters (shapes consistent with the module)
# ---------------------------------------------------------------------------
def init_params(key, C, H, M, num_points):
    shapes = {
        "sw1": (3, H), "sb1": (1, H), "sw2": (H, C), "sb2": (1, C),
        "ew1": (3, H), "eb1": (1, H), "ew2": (H, C), "eb2": (1, C),
        "ww_w": (C, C), "ww_b": (1, C),
        "ms_w1f": (C, M), "ms_w1s": (1, M), "ms_b1": (1, M),
        "ms_w2": (M, 2), "ms_b2": (1, 2), "ms_wscf": (C, 2), "ms_wscs": (1, 2), "ms_bsc": (1, 2),
        "me_w1f": (C, M), "me_w1s": (1, M), "me_b1": (1, M),
        "me_w2": (M, 3), "me_b2": (1, 3), "me_wscf": (C, 3), "me_wscs": (1, 3), "me_bsc": (1, 3),
    }
    src_rows = {"ms_w1s", "ms_wscs", "me_w1s", "me_wscs"}
    biases = {"sb1", "sb2", "eb1", "eb2", "ww_b",
              "ms_b1", "ms_b2", "ms_bsc", "me_b1", "me_b2", "me_bsc"}
    params = {}
    keys = jax.random.split(key, len(shapes))
    for (name, shape), k in zip(shapes.items(), keys):
        if name in src_rows:
            scale = 1.0 / num_points        # source columns see an O(num_points) sum
        elif name in biases:
            scale = 0.1
        else:
            scale = 1.0 / np.sqrt(max(shape[0], 1))
        params[name] = scale * jax.random.normal(k, shape, jnp.float32)
    return params


# ---------------------------------------------------------------------------
# pure-JAX reference (natural orientation, full Gram matrix, same bf16 policy)
# ---------------------------------------------------------------------------
def reference_forward(pcs, wstart, wend, num_points, C):
    N = num_points
    f32, bf16 = jnp.float32, jnp.bfloat16
    relu = jax.nn.relu

    def bdot(a, b):
        return jnp.dot(a.astype(bf16), b.astype(bf16), preferred_element_type=f32)

    def backbone(x, w):
        h = relu(bdot(x, w["w1"]) + w["b1"])
        return (bdot(h, w["w2f"]) + w["b2f"]).astype(bf16)             # (N, 2C) = [feat | w]

    def head(feat, src, w):
        h = relu(bdot(feat, w["h_w1f"]) + src * w["h_w1s"] + w["h_b1"])
        logits = (bdot(h, w["h_w2"]) + bdot(feat, w["h_wscf"])
                  + src * w["h_wscs"] + w["h_bh"])
        return jax.nn.log_softmax(logits, axis=-1)

    def per_batch(x):
        fw_s = backbone(x[:N], wstart)
        fw_e = backbone(x[N:], wend)
        feat_s, w_s = fw_s[:, :C], fw_s[:, C:]
        feat_e, w_e = fw_e[:, :C], fw_e[:, C:]
        gram = relu(jnp.dot(w_s, w_e.T, preferred_element_type=f32))
        src_s = jnp.sum(gram, axis=1, keepdims=True)                   # (N, 1)
        src_e = jnp.sum(gram, axis=0, keepdims=True).T                 # (N, 1)
        return head(feat_s, src_s, wstart), head(feat_e, src_e, wend)

    return jax.vmap(per_batch)(pcs)


if __name__ == "__main__":
    B = 2
    NUM_POINTS = 256      # module default 4096, scaled down; multiple of 128
    FEAT_DIM = 32         # encoder width C
    BB_HIDDEN = 64        # stand-in backbone hidden width
    MLP_DIM = 64          # module default 256, scaled down

    key = jax.random.PRNGKey(0)
    k_pts, k_par = jax.random.split(key)
    pcs = jax.random.normal(k_pts, (B, 2 * NUM_POINTS, 3), jnp.float32)
    params = init_params(k_par, FEAT_DIM, BB_HIDDEN, MLP_DIM, NUM_POINTS)

    fwd = jax.jit(functools.partial(seg_net_forward, num_points=NUM_POINTS,
                                    feat_dim=FEAT_DIM, bb_hidden=BB_HIDDEN, mlp_dim=MLP_DIM))
    seg_start, seg_end = jax.block_until_ready(fwd(pcs, params))

    assert seg_start.shape == (B, NUM_POINTS, 2)
    assert seg_end.shape == (B, NUM_POINTS, 3)

    # Reference uses the same mixed-precision policy (bf16 operands, f32 accumulation) so the
    # comparison isolates the tiling / orientation / packing logic of the kernel.
    wstart, wend = prepare_weights(params)
    ref_start, ref_end = reference_forward(pcs, wstart, wend, NUM_POINTS, FEAT_DIM)
    np.testing.assert_allclose(np.asarray(seg_start), np.asarray(ref_start), atol=5e-3, rtol=5e-3)
    np.testing.assert_allclose(np.asarray(seg_end), np.asarray(ref_end), atol=5e-3, rtol=5e-3)

    print("KERNEL_OK")
</pallas_src>

<mosaic_0001>
module attributes {stable_mosaic.version = 11 : i64} {
  func.func @seg_kernel(%arg0: i32, %arg1: i32, %arg2: memref<1x3x128xf32, #tpu.memory_space<vmem>>, %arg3: memref<1x3x256xf32, #tpu.memory_space<vmem>>, %arg4: memref<272x8xf32, #tpu.memory_space<vmem>>, %arg5: memref<224x64xbf16, #tpu.memory_space<vmem>>, %arg6: memref<272x8xf32, #tpu.memory_space<vmem>>, %arg7: memref<224x64xbf16, #tpu.memory_space<vmem>>, %arg8: memref<1x8x128xf32, #tpu.memory_space<vmem>>, %arg9: memref<1x8x256xf32, #tpu.memory_space<vmem>>, %arg10: memref<64x256xbf16, #tpu.memory_space<vmem>>, %arg11: memref<8x256xf32, #tpu.memory_space<vmem>>) attributes {dimension_semantics = [#tpu.dimension_semantics<parallel>, #tpu.dimension_semantics<arbitrary>], iteration_bounds = array<i64: 2, 2>, scalar_prefetch = 0 : i64, scratch_operands = 2 : i64, tpu.core_type = #tpu.core_type<tc>, window_params = [{transform_indices = @transform_0, window_bounds = array<i64: 1, 3, 128>}, {transform_indices = @transform_1, window_bounds = array<i64: 1, 3, 256>}, {pipeline_mode = #tpu.pipeline_mode<synchronous>, transform_indices = @transform_2, window_bounds = array<i64: 272, 8>}, {pipeline_mode = #tpu.pipeline_mode<synchronous>, transform_indices = @transform_3, window_bounds = array<i64: 224, 64>}, {pipeline_mode = #tpu.pipeline_mode<synchronous>, transform_indices = @transform_4, window_bounds = array<i64: 272, 8>}, {pipeline_mode = #tpu.pipeline_mode<synchronous>, transform_indices = @transform_5, window_bounds = array<i64: 224, 64>}, {transform_indices = @transform_6, window_bounds = array<i64: 1, 8, 128>}, {transform_indices = @transform_7, window_bounds = array<i64: 1, 8, 256>}]} {
    %c0_i32 = arith.constant 0 : i32
    %0 = arith.cmpi eq, %arg1, %c0_i32 : i32
    %1 = arith.extui %0 : i1 to i32
    %c0_i32_0 = arith.constant 0 : i32
    %2 = arith.cmpi ne, %1, %c0_i32_0 : i32
    scf.if %2 {
      %c0_43 = arith.constant 0 : index
      %c0_44 = arith.constant 0 : index
      %c0_45 = arith.constant 0 : index
      %121 = vector.load %arg3[%c0_43, %c0_44, %c0_45] : memref<1x3x256xf32, #tpu.memory_space<vmem>>, vector<1x3x256xf32>
      %122 = vector.shape_cast %121 : vector<1x3x256xf32> to vector<3x256xf32>
      %123 = arith.truncf %122 : vector<3x256xf32> to vector<3x256xbf16>
      %c0_46 = arith.constant 0 : index
      %c0_47 = arith.constant 0 : index
      %124 = vector.load %arg7[%c0_46, %c0_47] : memref<224x64xbf16, #tpu.memory_space<vmem>>, vector<64x3xbf16>
      %c0_48 = arith.constant 0 : index
      %c0_49 = arith.constant 0 : index
      %125 = vector.load %arg6[%c0_48, %c0_49] : memref<272x8xf32, #tpu.memory_space<vmem>>, vector<64x1xf32>
      %cst_50 = arith.constant dense<0.000000e+00> : vector<64x256xf32>
      %126 = tpu.matmul %124, %123, %cst_50 {dimension_numbers = #tpu.dot_dimension_numbers<[1], [0], [0], [1], [0, 0, 1, 1], [], []>} : vector<64x3xbf16>, vector<3x256xbf16>, vector<64x256xf32> -> vector<64x256xf32>
      %127 = vector.broadcast %125 : vector<64x1xf32> to vector<64x256xf32>
      %128 = arith.addf %126, %127 : vector<64x256xf32>
      %cst_51 = arith.constant 0.000000e+00 : f32
      %129 = vector.broadcast %cst_51 : f32 to vector<64x256xf32>
      %130 = arith.maximumf %128, %129 : vector<64x256xf32>
      %c64_52 = arith.constant 64 : index
      %c0_53 = arith.constant 0 : index
      %131 = vector.load %arg7[%c64_52, %c0_53] : memref<224x64xbf16, #tpu.memory_space<vmem>>, vector<64x64xbf16>
      %c64_54 = arith.constant 64 : index
      %c0_55 = arith.constant 0 : index
      %132 = vector.load %arg6[%c64_54, %c0_55] : memref<272x8xf32, #tpu.memory_space<vmem>>, vector<64x1xf32>
      %133 = arith.truncf %130 : vector<64x256xf32> to vector<64x256xbf16>
      %cst_56 = arith.constant dense<0.000000e+00> : vector<64x256xf32>
      %134 = tpu.matmul %131, %133, %cst_56 {dimension_numbers = #tpu.dot_dimension_numbers<[1], [0], [0], [1], [0, 0, 1, 1], [], []>} : vector<64x64xbf16>, vector<64x256xbf16>, vector<64x256xf32> -> vector<64x256xf32>
      %135 = vector.broadcast %132 : vector<64x1xf32> to vector<64x256xf32>
      %136 = arith.addf %134, %135 : vector<64x256xf32>
      %137 = arith.truncf %136 : vector<64x256xf32> to vector<64x256xbf16>
      %c0_57 = arith.constant 0 : index
      %c0_58 = arith.constant 0 : index
      %138 = vector.load %arg10[%c0_57, %c0_58] : memref<64x256xbf16, #tpu.memory_space<vmem>>, vector<64x256xbf16>
      tpu.vector_store %arg10[%c0_57, %c0_58], %137 {strides = array<i32>} : memref<64x256xbf16, #tpu.memory_space<vmem>>, vector<64x256xbf16>,
      %cst_59 = arith.constant 0.000000e+00 : f32
      %139 = vector.broadcast %cst_59 : f32 to vector<8x256xf32>
      %c0_60 = arith.constant 0 : index
      %c0_61 = arith.constant 0 : index
      %140 = vector.load %arg11[%c0_60, %c0_61] : memref<8x256xf32, #tpu.memory_space<vmem>>, vector<8x256xf32>
      tpu.vector_store %arg11[%c0_60, %c0_61], %139 {strides = array<i32>} : memref<8x256xf32, #tpu.memory_space<vmem>>, vector<8x256xf32>,
    } else {
    }
    %c0 = arith.constant 0 : index
    %c0_1 = arith.constant 0 : index
    %c0_2 = arith.constant 0 : index
    %3 = vector.load %arg2[%c0, %c0_1, %c0_2] : memref<1x3x128xf32, #tpu.memory_space<vmem>>, vector<1x3x128xf32>
    %4 = vector.shape_cast %3 : vector<1x3x128xf32> to vector<3x128xf32>
    %5 = arith.truncf %4 : vector<3x128xf32> to vector<3x128xbf16>
    %c0_3 = arith.constant 0 : index
    %c0_4 = arith.constant 0 : index
    %6 = vector.load %arg5[%c0_3, %c0_4] : memref<224x64xbf16, #tpu.memory_space<vmem>>, vector<64x3xbf16>
    %c0_5 = arith.constant 0 : index
    %c0_6 = arith.constant 0 : index
    %7 = vector.load %arg4[%c0_5, %c0_6] : memref<272x8xf32, #tpu.memory_space<vmem>>, vector<64x1xf32>
    %cst = arith.constant dense<0.000000e+00> : vector<64x128xf32>
    %8 = tpu.matmul %6, %5, %cst {dimension_numbers = #tpu.dot_dimension_numbers<[1], [0], [0], [1], [0, 0, 1, 1], [], []>} : vector<64x3xbf16>, vector<3x128xbf16>, vector<64x128xf32> -> vector<64x128xf32>
    %9 = vector.broadcast %7 : vector<64x1xf32> to vector<64x128xf32>
    %10 = arith.addf %8, %9 : vector<64x128xf32>
    %cst_7 = arith.constant 0.000000e+00 : f32
    %11 = vector.broadcast %cst_7 : f32 to vector<64x128xf32>
    %12 = arith.maximumf %10, %11 : vector<64x128xf32>
    %c64 = arith.constant 64 : index
    %c0_8 = arith.constant 0 : index
    %13 = vector.load %arg5[%c64, %c0_8] : memref<224x64xbf16, #tpu.memory_space<vmem>>, vector<64x64xbf16>
    %c64_9 = arith.constant 64 : index
    %c0_10 = arith.constant 0 : index
    %14 = vector.load %arg4[%c64_9, %c0_10] : memref<272x8xf32, #tpu.memory_space<vmem>>, vector<64x1xf32>
    %15 = arith.truncf %12 : vector<64x128xf32> to vector<64x128xbf16>
    %cst_11 = arith.constant dense<0.000000e+00> : vector<64x128xf32>
    %16 = tpu.matmul %13, %15, %cst_11 {dimension_numbers = #tpu.dot_dimension_numbers<[1], [0], [0], [1], [0, 0, 1, 1], [], []>} : vector<64x64xbf16>, vector<64x128xbf16>, vector<64x128xf32> -> vector<64x128xf32>
    %17 = vector.broadcast %14 : vector<64x1xf32> to vector<64x128xf32>
    %18 = arith.addf %16, %17 : vector<64x128xf32>
    %19 = arith.truncf %18 : vector<64x128xf32> to vector<64x128xbf16>
    %20 = vector.extract_strided_slice %19 {offsets = [0, 0], sizes = [32, 128], strides = [1, 1]} : vector<64x128xbf16> to vector<32x128xbf16>
    %21 = vector.extract_strided_slice %19 {offsets = [32, 0], sizes = [32, 128], strides = [1, 1]} : vector<64x128xbf16> to vector<32x128xbf16>
    %cst_12 = arith.constant 0.000000e+00 : f32
    %22 = vector.broadcast %cst_12 : f32 to vector<128x128xf32>
    %c32 = arith.constant 32 : index
    %c0_13 = arith.constant 0 : index
    %23 = vector.load %arg10[%c32, %c0_13] : memref<64x256xbf16, #tpu.memory_space<vmem>>, vector<32x256xbf16>
    %cst_14 = arith.constant dense<0.000000e+00> : vector<128x256xf32>
    %24 = tpu.matmul %21, %23, %cst_14 {dimension_numbers = #tpu.dot_dimension_numbers<[0], [0], [1], [1], [0, 1, 1, 1], [], []>} : vector<32x128xbf16>, vector<32x256xbf16>, vector<128x256xf32> -> vector<128x256xf32>
    %cst_15 = arith.constant 0.000000e+00 : f32
    %25 = vector.broadcast %cst_15 : f32 to vector<128x256xf32>
    %26 = arith.maximumf %24, %25 : vector<128x256xf32>
    %27 = vector.extract_strided_slice %26 {offsets = [0, 0], sizes = [8, 256], strides = [1, 1]} : vector<128x256xf32> to vector<8x256xf32>
    %28 = vector.extract_strided_slice %26 {offsets = [8, 0], sizes = [8, 256], strides = [1, 1]} : vector<128x256xf32> to vector<8x256xf32>
    %29 = arith.addf %27, %28 : vector<8x256xf32>
    %30 = vector.extract_strided_slice %26 {offsets = [16, 0], sizes = [8, 256], strides = [1, 1]} : vector<128x256xf32> to vector<8x256xf32>
    %31 = arith.addf %29, %30 : vector<8x256xf32>
    %32 = vector.extract_strided_slice %26 {offsets = [24, 0], sizes = [8, 256], strides = [1, 1]} : vector<128x256xf32> to vector<8x256xf32>
    %33 = arith.addf %31, %32 : vector<8x256xf32>
    %34 = vector.extract_strided_slice %26 {offsets = [32, 0], sizes = [8, 256], strides = [1, 1]} : vector<128x256xf32> to vector<8x256xf32>
    %35 = arith.addf %33, %34 : vector<8x256xf32>
    %36 = vector.extract_strided_slice %26 {offsets = [40, 0], sizes = [8, 256], strides = [1, 1]} : vector<128x256xf32> to vector<8x256xf32>
    %37 = arith.addf %35, %36 : vector<8x256xf32>
    %38 = vector.extract_strided_slice %26 {offsets = [48, 0], sizes = [8, 256], strides = [1, 1]} : vector<128x256xf32> to vector<8x256xf32>
    %39 = arith.addf %37, %38 : vector<8x256xf32>
    %40 = vector.extract_strided_slice %26 {offsets = [56, 0], sizes = [8, 256], strides = [1, 1]} : vector<128x256xf32> to vector<8x256xf32>
    %41 = arith.addf %39, %40 : vector<8x256xf32>
    %42 = vector.extract_strided_slice %26 {offsets = [64, 0], sizes = [8, 256], strides = [1, 1]} : vector<128x256xf32> to vector<8x256xf32>
    %43 = arith.addf %41, %42 : vector<8x256xf32>
    %44 = vector.extract_strided_slice %26 {offsets = [72, 0], sizes = [8, 256], strides = [1, 1]} : vector<128x256xf32> to vector<8x256xf32>
    %45 = arith.addf %43, %44 : vector<8x256xf32>
    %46 = vector.extract_strided_slice %26 {offsets = [80, 0], sizes = [8, 256], strides = [1, 1]} : vector<128x256xf32> to vector<8x256xf32>
    %47 = arith.addf %45, %46 : vector<8x256xf32>
    %48 = vector.extract_strided_slice %26 {offsets = [88, 0], sizes = [8, 256], strides = [1, 1]} : vector<128x256xf32> to vector<8x256xf32>
    %49 = arith.addf %47, %48 : vector<8x256xf32>
    %50 = vector.extract_strided_slice %26 {offsets = [96, 0], sizes = [8, 256], strides = [1, 1]} : vector<128x256xf32> to vector<8x256xf32>
    %51 = arith.addf %49, %50 : vector<8x256xf32>
    %52 = vector.extract_strided_slice %26 {offsets = [104, 0], sizes = [8, 256], strides = [1, 1]} : vector<128x256xf32> to vector<8x256xf32>
    %53 = arith.addf %51, %52 : vector<8x256xf32>
    %54 = vector.extract_strided_slice %26 {offsets = [112, 0], sizes = [8, 256], strides = [1, 1]} : vector<128x256xf32> to vector<8x256xf32>
    %55 = arith.addf %53, %54 : vector<8x256xf32>
    %56 = vector.extract_strided_slice %26 {offsets = [120, 0], sizes = [8, 256], strides = [1, 1]} : vector<128x256xf32> to vector<8x256xf32>
    %57 = arith.addf %55, %56 : vector<8x256xf32>
    %c0_16 = arith.constant 0 : index
    %c0_17 = arith.constant 0 : index
    %58 = vector.load %arg11[%c0_16, %c0_17] : memref<8x256xf32, #tpu.memory_space<vmem>>, vector<8x256xf32>
    %59 = arith.addf %58, %57 : vector<8x256xf32>
    %c0_18 = arith.constant 0 : index
    %c0_19 = arith.constant 0 : index
    %60 = vector.load %arg11[%c0_18, %c0_19] : memref<8x256xf32, #tpu.memory_space<vmem>>, vector<8x256xf32>
    tpu.vector_store %arg11[%c0_18, %c0_19], %59 {strides = array<i32>} : memref<8x256xf32, #tpu.memory_space<vmem>>, vector<8x256xf32>,
    %61 = vector.extract_strided_slice %26 {offsets = [0, 0], sizes = [128, 128], strides = [1, 1]} : vector<128x256xf32> to vector<128x128xf32>
    %62 = arith.addf %22, %61 : vector<128x128xf32>
    %63 = vector.extract_strided_slice %26 {offsets = [0, 128], sizes = [128, 128], strides = [1, 1]} : vector<128x256xf32> to vector<128x128xf32>
    %64 = arith.addf %62, %63 : vector<128x128xf32>
    %cst_20 = arith.constant 1.000000e+00 : f32
    %65 = vector.broadcast %cst_20 : f32 to vector<8x128xf32>
    %cst_21 = arith.constant dense<0.000000e+00> : vector<8x128xf32>
    %66 = tpu.matmul %65, %64, %cst_21 {dimension_numbers = #tpu.dot_dimension_numbers<[1], [1], [0], [0], [0, 0, 1, 0], [], []>} : vector<8x128xf32>, vector<128x128xf32>, vector<8x128xf32> -> vector<8x128xf32>
    %67 = vector.extract_strided_slice %66 {offsets = [0, 0], sizes = [1, 128], strides = [1, 1]} : vector<8x128xf32> to vector<1x128xf32>
    %c128 = arith.constant 128 : index
    %c0_22 = arith.constant 0 : index
    %68 = vector.load %arg5[%c128, %c0_22] : memref<224x64xbf16, #tpu.memory_space<vmem>>, vector<64x32xbf16>
    %c128_23 = arith.constant 128 : index
    %c0_24 = arith.constant 0 : index
    %69 = vector.load %arg4[%c128_23, %c0_24] : memref<272x8xf32, #tpu.memory_space<vmem>>, vector<64x1xf32>
    %c192 = arith.constant 192 : index
    %c0_25 = arith.constant 0 : index
    %70 = vector.load %arg4[%c192, %c0_25] : memref<272x8xf32, #tpu.memory_space<vmem>>, vector<64x1xf32>
    %cst_26 = arith.constant dense<0.000000e+00> : vector<64x128xf32>
    %71 = tpu.matmul %68, %20, %cst_26 {dimension_numbers = #tpu.dot_dimension_numbers<[1], [0], [0], [1], [0, 0, 1, 1], [], []>} : vector<64x32xbf16>, vector<32x128xbf16>, vector<64x128xf32> -> vector<64x128xf32>
    %72 = vector.broadcast %69 : vector<64x1xf32> to vector<64x128xf32>
    %73 = vector.broadcast %67 : vector<1x128xf32> to vector<64x128xf32>
    %74 = arith.mulf %72, %73 : vector<64x128xf32>
    %75 = arith.addf %71, %74 : vector<64x128xf32>
    %76 = vector.broadcast %70 : vector<64x1xf32> to vector<64x128xf32>
    %77 = arith.addf %75, %76 : vector<64x128xf32>
    %cst_27 = arith.constant 0.000000e+00 : f32
    %78 = vector.broadcast %cst_27 : f32 to vector<64x128xf32>
    %79 = arith.maximumf %77, %78 : vector<64x128xf32>
    %c192_28 = arith.constant 192 : index
    %c0_29 = arith.constant 0 : index
    %80 = vector.load %arg5[%c192_28, %c0_29] : memref<224x64xbf16, #tpu.memory_space<vmem>>, vector<8x64xbf16>
    %c208 = arith.constant 208 : index
    %c0_30 = arith.constant 0 : index
    %81 = vector.load %arg5[%c208, %c0_30] : memref<224x64xbf16, #tpu.memory_space<vmem>>, vector<8x32xbf16>
    %c256 = arith.constant 256 : index
    %c0_31 = arith.constant 0 : index
    %82 = vector.load %arg4[%c256, %c0_31] : memref<272x8xf32, #tpu.memory_space<vmem>>, vector<8x1xf32>
    %c264 = arith.constant 264 : index
    %c0_32 = arith.constant 0 : index
    %83 = vector.load %arg4[%c264, %c0_32] : memref<272x8xf32, #tpu.memory_space<vmem>>, vector<8x1xf32>
    %84 = arith.truncf %79 : vector<64x128xf32> to vector<64x128xbf16>
    %cst_33 = arith.constant dense<0.000000e+00> : vector<8x128xf32>
    %85 = tpu.matmul %80, %84, %cst_33 {dimension_numbers = #tpu.dot_dimension_numbers<[1], [0], [0], [1], [0, 0, 1, 1], [], []>} : vector<8x64xbf16>, vector<64x128xbf16>, vector<8x128xf32> -> vector<8x128xf32>
    %cst_34 = arith.constant dense<0.000000e+00> : vector<8x128xf32>
    %86 = tpu.matmul %81, %20, %cst_34 {dimension_numbers = #tpu.dot_dimension_numbers<[1], [0], [0], [1], [0, 0, 1, 1], [], []>} : vector<8x32xbf16>, vector<32x128xbf16>, vector<8x128xf32> -> vector<8x128xf32>
    %87 = arith.addf %85, %86 : vector<8x128xf32>
    %88 = vector.broadcast %82 : vector<8x1xf32> to vector<8x128xf32>
    %89 = vector.broadcast %67 : vector<1x128xf32> to vector<8x128xf32>
    %90 = arith.mulf %88, %89 : vector<8x128xf32>
    %91 = arith.addf %87, %90 : vector<8x128xf32>
    %92 = vector.broadcast %83 : vector<8x1xf32> to vector<8x128xf32>
    %93 = arith.addf %91, %92 : vector<8x128xf32>
    %94 = tpu.iota {dimensions = array<i32: 0>} : vector<8x1xi32>
    %c2_i32 = arith.constant 2 : i32
    %95 = vector.broadcast %c2_i32 : i32 to vector<8x1xi32>
    %96 = arith.cmpi slt, %94, %95 : vector<8x1xi32>
    %cst_35 = arith.constant 0xFF800000 : f32
    %97 = vector.shape_cast %96 : vector<8x1xi1> to vector<8x1xi1>
    %98 = vector.broadcast %97 : vector<8x1xi1> to vector<8x128xi1>
    %99 = vector.broadcast %cst_35 : f32 to vector<8x128xf32>
    %100 = arith.select %98, %93, %99 : vector<8x128xi1>, vector<8x128xf32>
    %cst_36 = arith.constant dense<0xFF800000> : vector<128xf32>
    %101 = vector.multi_reduction <maximumf>, %100, %cst_36 [0] : vector<8x128xf32> to vector<128xf32>
    %102 = vector.shape_cast %101 : vector<128xf32> to vector<1x128xf32>
    %103 = vector.broadcast %102 : vector<1x128xf32> to vector<8x128xf32>
    %104 = arith.subf %93, %103 : vector<8x128xf32>
    %105 = math.exp %104 : vector<8x128xf32>
    %cst_37 = arith.constant 0.000000e+00 : f32
    %106 = vector.shape_cast %96 : vector<8x1xi1> to vector<8x1xi1>
    %107 = vector.broadcast %106 : vector<8x1xi1> to vector<8x128xi1>
    %108 = vector.broadcast %cst_37 : f32 to vector<8x128xf32>
    %109 = arith.select %107, %105, %108 : vector<8x128xi1>, vector<8x128xf32>
    %cst_38 = arith.constant dense<0.000000e+00> : vector<128xf32>
    %110 = vector.multi_reduction <add>, %109, %cst_38 [0] : vector<8x128xf32> to vector<128xf32>
    %111 = vector.shape_cast %110 : vector<128xf32> to vector<1x128xf32>
    %112 = math.log %111 : vector<1x128xf32>
    %113 = vector.broadcast %112 : vector<1x128xf32> to vector<8x128xf32>
    %114 = arith.subf %104, %113 : vector<8x128xf32>
    %c0_39 = arith.constant 0 : index
    %c0_40 = arith.constant 0 : index
    %c0_41 = arith.constant 0 : index
    %115 = vector.load %arg8[%c0_39, %c0_40, %c0_41] : memref<1x8x128xf32, #tpu.memory_space<vmem>>, vector<1x8x128xf32>
    %116 = vector.shape_cast %115 : vector<1x8x128xf32> to vector<8x128xf32>
    %117 = vector.shape_cast %114 : vector<8x128xf32> to vector<1x8x128xf32>
    tpu.vector_store %arg8[%c0_39, %c0_40, %c0_41], %117 {strides = array<i32>} : memref<1x8x128xf32, #tpu.memory_space<vmem>>, vector<1x8x128xf32>,
    %c1_i32 = arith.constant 1 : i32
    %118 = arith.cmpi eq, %arg1, %c1_i32 : i32
    %119 = arith.extui %118 : i1 to i32
    %c0_i32_42 = arith.constant 0 : i32
    %120 = arith.cmpi ne, %119, %c0_i32_42 : i32
    scf.if %120 {
      %c0_43 = arith.constant 0 : index
      %c0_44 = arith.constant 0 : index
      %121 = vector.load %arg10[%c0_43, %c0_44] : memref<64x256xbf16, #tpu.memory_space<vmem>>, vector<32x256xbf16>
      %c0_45 = arith.constant 0 : index
      %c0_46 = arith.constant 0 : index
      %122 = vector.load %arg11[%c0_45, %c0_46] : memref<8x256xf32, #tpu.memory_space<vmem>>, vector<8x256xf32>
      %cst_47 = arith.constant dense<0.000000e+00> : vector<256xf32>
      %123 = vector.multi_reduction <add>, %122, %cst_47 [0] : vector<8x256xf32> to vector<256xf32>
      %124 = vector.shape_cast %123 : vector<256xf32> to vector<1x256xf32>
      %c128_48 = arith.constant 128 : index
      %c0_49 = arith.constant 0 : index
      %125 = vector.load %arg7[%c128_48, %c0_49] : memref<224x64xbf16, #tpu.memory_space<vmem>>, vector<64x32xbf16>
      %c128_50 = arith.constant 128 : index
      %c0_51 = arith.constant 0 : index
      %126 = vector.load %arg6[%c128_50, %c0_51] : memref<272x8xf32, #tpu.memory_space<vmem>>, vector<64x1xf32>
      %c192_52 = arith.constant 192 : index
      %c0_53 = arith.constant 0 : index
      %127 = vector.load %arg6[%c192_52, %c0_53] : memref<272x8xf32, #tpu.memory_space<vmem>>, vector<64x1xf32>
      %cst_54 = arith.constant dense<0.000000e+00> : vector<64x256xf32>
      %128 = tpu.matmul %125, %121, %cst_54 {dimension_numbers = #tpu.dot_dimension_numbers<[1], [0], [0], [1], [0, 0, 1, 1], [], []>} : vector<64x32xbf16>, vector<32x256xbf16>, vector<64x256xf32> -> vector<64x256xf32>
      %129 = vector.broadcast %126 : vector<64x1xf32> to vector<64x256xf32>
      %130 = vector.broadcast %124 : vector<1x256xf32> to vector<64x256xf32>
      %131 = arith.mulf %129, %130 : vector<64x256xf32>
      %132 = arith.addf %128, %131 : vector<64x256xf32>
      %133 = vector.broadcast %127 : vector<64x1xf32> to vector<64x256xf32>
      %134 = arith.addf %132, %133 : vector<64x256xf32>
      %cst_55 = arith.constant 0.000000e+00 : f32
      %135 = vector.broadcast %cst_55 : f32 to vector<64x256xf32>
      %136 = arith.maximumf %134, %135 : vector<64x256xf32>
      %c192_56 = arith.constant 192 : index
      %c0_57 = arith.constant 0 : index
      %137 = vector.load %arg7[%c192_56, %c0_57] : memref<224x64xbf16, #tpu.memory_space<vmem>>, vector<8x64xbf16>
      %c208_58 = arith.constant 208 : index
      %c0_59 = arith.constant 0 : index
      %138 = vector.load %arg7[%c208_58, %c0_59] : memref<224x64xbf16, #tpu.memory_space<vmem>>, vector<8x32xbf16>
      %c256_60 = arith.constant 256 : index
      %c0_61 = arith.constant 0 : index
      %139 = vector.load %arg6[%c256_60, %c0_61] : memref<272x8xf32, #tpu.memory_space<vmem>>, vector<8x1xf32>
      %c264_62 = arith.constant 264 : index
      %c0_63 = arith.constant 0 : index
      %140 = vector.load %arg6[%c264_62, %c0_63] : memref<272x8xf32, #tpu.memory_space<vmem>>, vector<8x1xf32>
      %141 = arith.truncf %136 : vector<64x256xf32> to vector<64x256xbf16>
      %cst_64 = arith.constant dense<0.000000e+00> : vector<8x256xf32>
      %142 = tpu.matmul %137, %141, %cst_64 {dimension_numbers = #tpu.dot_dimension_numbers<[1], [0], [0], [1], [0, 0, 1, 1], [], []>} : vector<8x64xbf16>, vector<64x256xbf16>, vector<8x256xf32> -> vector<8x256xf32>
      %cst_65 = arith.constant dense<0.000000e+00> : vector<8x256xf32>
      %143 = tpu.matmul %138, %121, %cst_65 {dimension_numbers = #tpu.dot_dimension_numbers<[1], [0], [0], [1], [0, 0, 1, 1], [], []>} : vector<8x32xbf16>, vector<32x256xbf16>, vector<8x256xf32> -> vector<8x256xf32>
      %144 = arith.addf %142, %143 : vector<8x256xf32>
      %145 = vector.broadcast %139 : vector<8x1xf32> to vector<8x256xf32>
      %146 = vector.broadcast %124 : vector<1x256xf32> to vector<8x256xf32>
      %147 = arith.mulf %145, %146 : vector<8x256xf32>
      %148 = arith.addf %144, %147 : vector<8x256xf32>
      %149 = vector.broadcast %140 : vector<8x1xf32> to vector<8x256xf32>
      %150 = arith.addf %148, %149 : vector<8x256xf32>
      %151 = tpu.iota {dimensions = array<i32: 0>} : vector<8x1xi32>
      %c3_i32 = arith.constant 3 : i32
      %152 = vector.broadcast %c3_i32 : i32 to vector<8x1xi32>
      %153 = arith.cmpi slt, %151, %152 : vector<8x1xi32>
      %cst_66 = arith.constant 0xFF800000 : f32
      %154 = vector.shape_cast %153 : vector<8x1xi1> to vector<8x1xi1>
      %155 = vector.broadcast %154 : vector<8x1xi1> to vector<8x256xi1>
      %156 = vector.broadcast %cst_66 : f32 to vector<8x256xf32>
      %157 = arith.select %155, %150, %156 : vector<8x256xi1>, vector<8x256xf32>
      %cst_67 = arith.constant dense<0xFF800000> : vector<256xf32>
      %158 = vector.multi_reduction <maximumf>, %157, %cst_67 [0] : vector<8x256xf32> to vector<256xf32>
      %159 = vector.shape_cast %158 : vector<256xf32> to vector<1x256xf32>
      %160 = vector.broadcast %159 : vector<1x256xf32> to vector<8x256xf32>
      %161 = arith.subf %150, %160 : vector<8x256xf32>
      %162 = math.exp %161 : vector<8x256xf32>
      %cst_68 = arith.constant 0.000000e+00 : f32
      %163 = vector.shape_cast %153 : vector<8x1xi1> to vector<8x1xi1>
      %164 = vector.broadcast %163 : vector<8x1xi1> to vector<8x256xi1>
      %165 = vector.broadcast %cst_68 : f32 to vector<8x256xf32>
      %166 = arith.select %164, %162, %165 : vector<8x256xi1>, vector<8x256xf32>
      %cst_69 = arith.constant dense<0.000000e+00> : vector<256xf32>
      %167 = vector.multi_reduction <add>, %166, %cst_69 [0] : vector<8x256xf32> to vector<256xf32>
      %168 = vector.shape_cast %167 : vector<256xf32> to vector<1x256xf32>
      %169 = math.log %168 : vector<1x256xf32>
      %170 = vector.broadcast %169 : vector<1x256xf32> to vector<8x256xf32>
      %171 = arith.subf %161, %170 : vector<8x256xf32>
      %c0_70 = arith.constant 0 : index
      %c0_71 = arith.constant 0 : index
      %c0_72 = arith.constant 0 : index
      %172 = vector.load %arg9[%c0_70, %c0_71, %c0_72] : memref<1x8x256xf32, #tpu.memory_space<vmem>>, vector<1x8x256xf32>
      %173 = vector.shape_cast %172 : vector<1x8x256xf32> to vector<8x256xf32>
      %174 = vector.shape_cast %171 : vector<8x256xf32> to vector<1x8x256xf32>
      tpu.vector_store %arg9[%c0_70, %c0_71, %c0_72], %174 {strides = array<i32>} : memref<1x8x256xf32, #tpu.memory_space<vmem>>, vector<1x8x256xf32>,
    } else {
    }
    return
  }
  func.func @transform_0(%arg0: i32, %arg1: i32) -> (i32, i32, i32) {
    %c0_i32 = arith.constant 0 : i32
    %c0_i32_0 = arith.constant 0 : i32
    return %arg0, %c0_i32, %arg1 : i32, i32, i32
  }
  func.func @transform_1(%arg0: i32, %arg1: i32) -> (i32, i32, i32) {
    %c0_i32 = arith.constant 0 : i32
    %c0_i32_0 = arith.constant 0 : i32
    %c0_i32_1 = arith.constant 0 : i32
    return %arg0, %c0_i32, %c0_i32_0 : i32, i32, i32
  }
  func.func @transform_2(%arg0: i32, %arg1: i32) -> (i32, i32) {
    %c0_i32 = arith.constant 0 : i32
    %c0_i32_0 = arith.constant 0 : i32
    %c0_i32_1 = arith.constant 0 : i32
    return %c0_i32, %c0_i32_0 : i32, i32
  }
  func.func @transform_3(%arg0: i32, %arg1: i32) -> (i32, i32) {
    %c0_i32 = arith.constant 0 : i32
    %c0_i32_0 = arith.constant 0 : i32
    %c0_i32_1 = arith.constant 0 : i32
    return %c0_i32, %c0_i32_0 : i32, i32
  }
  func.func @transform_4(%arg0: i32, %arg1: i32) -> (i32, i32) {
    %c0_i32 = arith.constant 0 : i32
    %c0_i32_0 = arith.constant 0 : i32
    %c0_i32_1 = arith.constant 0 : i32
    return %c0_i32, %c0_i32_0 : i32, i32
  }
  func.func @transform_5(%arg0: i32, %arg1: i32) -> (i32, i32) {
    %c0_i32 = arith.constant 0 : i32
    %c0_i32_0 = arith.constant 0 : i32
    %c0_i32_1 = arith.constant 0 : i32
    return %c0_i32, %c0_i32_0 : i32, i32
  }
  func.func @transform_6(%arg0: i32, %arg1: i32) -> (i32, i32, i32) {
    %c0_i32 = arith.constant 0 : i32
    %c0_i32_0 = arith.constant 0 : i32
    return %arg0, %c0_i32, %arg1 : i32, i32, i32
  }
  func.func @transform_7(%arg0: i32, %arg1: i32) -> (i32, i32, i32) {
    %c0_i32 = arith.constant 0 : i32
    %c0_i32_0 = arith.constant 0 : i32
    %c0_i32_1 = arith.constant 0 : i32
    return %arg0, %c0_i32, %c0_i32_0 : i32, i32, i32
  }
}

</mosaic_0001>

<llo_original>
// kernel: seg_net_forward.1
$region0: #{seg_net_forward.1}
  #allocation0 [shape = 'u32[]', space=smem, size = 0x4, offset = 0x4, fixed_abs, tag = 'smem constant byte address 0x4 - core index']
  #allocation1 [shape = 'u32[144,128]{1,0:T(1,128)}', space=vmem, size = 0x12000, scoped, tag = 'internal scratch']
  #allocation2 [shape = 'bf16[64,256]{1,0:T(16,128)(2,1)}', space=vmem, size = 0x8000, scoped, tag = 'scratch operand']
  #allocation3 [shape = 'f32[8,256]{1,0:T(8,128)}', space=vmem, size = 0x2000, scoped, tag = 'scratch operand']
  %s0 = inlined_call_operand.vmem [shape: f32[2,3,256], index: 0, kind: input, shape index: {}]
  %s1 = inlined_call_operand.vmem [shape: f32[2,3,256], index: 1, kind: input, shape index: {}]
  %s2 = inlined_call_operand.vmem [shape: f32[272,8], index: 2, kind: input, shape index: {}]
  %s3 = inlined_call_operand.vmem [shape: bf16[224,64], index: 3, kind: input, shape index: {}]
  %s4 = inlined_call_operand.vmem [shape: f32[272,8], index: 4, kind: input, shape index: {}]
  %s5 = inlined_call_operand.vmem [shape: bf16[224,64], index: 5, kind: input, shape index: {}]
  %s6 = inlined_call_operand.vmem [shape: f32[2,8,256], index: 6, kind: output, shape index: {0}]
  %s7 = inlined_call_operand.vmem [shape: f32[2,8,256], index: 7, kind: output, shape index: {1}]
  %8 = xla_tuple %s6, %s7
  %s9 = sld [smem:[#allocation0]]
  $region73: #{seg_net_forward.1} parent=0
    _
  %s11 = ssub.s32 1, %s9
  %s12 = scalar_select 0, %s11, %s9
  loop: start=0, step=1, limit=6
  $region2: #{seg_net_forward.1} parent=0 // loop_pre_header
    _
  $region3: #{seg_net_forward.1} parent=0 // loop_header
    %s14 = sphi 0, %s18
    %p15 = scmp.ge.s32.totalorder %s14, 6
    %s21 = sphi 0, %s33
    %s22 = sphi 0, %s29
    %s23 = sphi 0, %s21
    %s24 = sphi 0, %s22
    %s25 = sphi 0, %s23
    %s26 = sphi 0, %s24
    %s38 = sphi 0, %s40
    %s41 = sphi 0, %s38
    %s42 = sphi 0, %s41
    %s58 = sphi 0, %s42
    %s64 = sphi 0, %s66
    %s67 = sphi 0, %s64
    %s68 = sphi 0, %s67
    %s84 = sphi 0, %s68
    %s88 = sphi 0, %s88
    %s90 = sphi 0, %s88
    %s91 = sphi 0, %s90
    %s105 = sphi 0, %s91
    %s109 = sphi 0, %s109
    %s111 = sphi 0, %s109
    %s112 = sphi 0, %s111
    %s126 = sphi 0, %s112
    %s130 = sphi 0, %s130
    %s132 = sphi 0, %s130
    %s133 = sphi 0, %s132
    %s147 = sphi 0, %s133
    %s151 = sphi 0, %s151
    %s153 = sphi 0, %s151
    %s154 = sphi 0, %s153
    %s168 = sphi 0, %s154
    %s176 = sphi 0, %s178
    %s179 = sphi 0, %s176
    %s180 = sphi 0, %s179
    %s196 = sphi 0, %s180
    %s202 = sphi 0, %s204
    %s205 = sphi 0, %s202
    %s206 = sphi 0, %s205
    %s222 = sphi 0, %s206
  $region4: #{seg_net_forward.1} parent=0 // loop_header_branch
    %17 = sbr.rel (%p15) target = $region8
  $region5: #{seg_net_forward.1} parent=0 // loop_body
    %s19 = ssub.s32 %s14, 1
    %s20 = ssub.s32 %s14, 2
    %s27 = sadd.s32 1, %s22
    %p28 = scmp.ge.s32.totalorder %s27, 2
    %s29 = scalar_select %p28, 0, %s27
    %s30 = sadd.s32 1, %s21
    %s31 = scalar_select %p28, %s30, %s21
    %p32 = scmp.ge.s32.totalorder %s31, 2
    %s33 = scalar_select %p32, 0, %s31
    %s34 = ssub.s32 %s21, %s33
    %s35 = ssub.s32 %s22, %s29
    %s36 = sor.u32 %s34, %s35
    %p37 = scmp.eq.s32.totalorder %s36, 0
    %s39 = sadd.s32 %s38, 1
    %s40 = scalar_select %p37, %s38, %s39
    %p43 = pneg %p37
    %p44 = scmp.eq.s32.totalorder %s14, 3
    %p45 = por %p43, %p44
    %p46 = scmp.ne.s32.totalorder %s38, %s41
    %p47 = scmp.eq.s32.totalorder %s14, 0
    %p48 = por %p46, %p47
    %p49 = scmp.ne.s32.totalorder %s38, %s41
    %p50 = scmp.eq.s32.totalorder %s19, 3
    %p51 = por %p49, %p50
    %p52 = scmp.ne.s32.totalorder %s41, %s42
    %p53 = scmp.eq.s32.totalorder %s19, 0
    %p54 = por %p52, %p53
    %p55 = scmp.ne.s32.totalorder %s41, %s42
    %p56 = scmp.eq.s32.totalorder %s20, 3
    %p57 = por %p55, %p56
    %p59 = scmp.ne.s32.totalorder %s42, %s58
    %p60 = scmp.eq.s32.totalorder %s20, 0
    %p61 = por %p59, %p60
    %s62 = ssub.s32 %s21, %s33
    %p63 = scmp.eq.s32.totalorder %s62, 0
    %s65 = sadd.s32 %s64, 1
    %s66 = scalar_select %p63, %s64, %s65
    %p69 = pneg %p63
    %p70 = scmp.eq.s32.totalorder %s14, 3
    %p71 = por %p69, %p70
    %p72 = scmp.ne.s32.totalorder %s64, %s67
    %p73 = scmp.eq.s32.totalorder %s14, 0
    %p74 = por %p72, %p73
    %p75 = scmp.ne.s32.totalorder %s64, %s67
    %p76 = scmp.eq.s32.totalorder %s19, 3
    %p77 = por %p75, %p76
    %p78 = scmp.ne.s32.totalorder %s67, %s68
    %p79 = scmp.eq.s32.totalorder %s19, 0
    %p80 = por %p78, %p79
    %p81 = scmp.ne.s32.totalorder %s67, %s68
    %p82 = scmp.eq.s32.totalorder %s20, 3
    %p83 = por %p81, %p82
    %p85 = scmp.ne.s32.totalorder %s68, %s84
    %p86 = scmp.eq.s32.totalorder %s20, 0
    %p87 = por %p85, %p86
    %s89 = sadd.s32 %s88, 1
    %p92 = scmp.eq.s32.totalorder %s14, 3
    %p93 = scmp.ne.s32.totalorder %s88, %s90
    %p94 = scmp.eq.s32.totalorder %s14, 0
    %p95 = por %p93, %p94
    %p96 = scmp.ne.s32.totalorder %s88, %s90
    %p97 = scmp.eq.s32.totalorder %s19, 3
    %p98 = por %p96, %p97
    %p99 = scmp.ne.s32.totalorder %s90, %s91
    %p100 = scmp.eq.s32.totalorder %s19, 0
    %p101 = por %p99, %p100
    %p102 = scmp.ne.s32.totalorder %s90, %s91
    %p103 = scmp.eq.s32.totalorder %s20, 3
    %p104 = por %p102, %p103
    %p106 = scmp.ne.s32.totalorder %s91, %s105
    %p107 = scmp.eq.s32.totalorder %s20, 0
    %p108 = por %p106, %p107
    %s110 = sadd.s32 %s109, 1
    %p113 = scmp.eq.s32.totalorder %s14, 3
    %p114 = scmp.ne.s32.totalorder %s109, %s111
    %p115 = scmp.eq.s32.totalorder %s14, 0
    %p116 = por %p114, %p115
    %p117 = scmp.ne.s32.totalorder %s109, %s111
    %p118 = scmp.eq.s32.totalorder %s19, 3
    %p119 = por %p117, %p118
    %p120 = scmp.ne.s32.totalorder %s111, %s112
    %p121 = scmp.eq.s32.totalorder %s19, 0
    %p122 = por %p120, %p121
    %p123 = scmp.ne.s32.totalorder %s111, %s112
    %p124 = scmp.eq.s32.totalorder %s20, 3
    %p125 = por %p123, %p124
    %p127 = scmp.ne.s32.totalorder %s112, %s126
    %p128 = scmp.eq.s32.totalorder %s20, 0
    %p129 = por %p127, %p128
    %s131 = sadd.s32 %s130, 1
    %p134 = scmp.eq.s32.totalorder %s14, 3
    %p135 = scmp.ne.s32.totalorder %s130, %s132
    %p136 = scmp.eq.s32.totalorder %s14, 0
    %p137 = por %p135, %p136
    %p138 = scmp.ne.s32.totalorder %s130, %s132
    %p139 = scmp.eq.s32.totalorder %s19, 3
    %p140 = por %p138, %p139
    %p141 = scmp.ne.s32.totalorder %s132, %s133
    %p142 = scmp.eq.s32.totalorder %s19, 0
    %p143 = por %p141, %p142
    %p144 = scmp.ne.s32.totalorder %s132, %s133
    %p145 = scmp.eq.s32.totalorder %s20, 3
    %p146 = por %p144, %p145
    %p148 = scmp.ne.s32.totalorder %s133, %s147
    %p149 = scmp.eq.s32.totalorder %s20, 0
    %p150 = por %p148, %p149
    %s152 = sadd.s32 %s151, 1
    %p155 = scmp.eq.s32.totalorder %s14, 3
    %p156 = scmp.ne.s32.totalorder %s151, %s153
    %p157 = scmp.eq.s32.totalorder %s14, 0
    %p158 = por %p156, %p157
    %p159 = scmp.ne.s32.totalorder %s151, %s153
    %p160 = scmp.eq.s32.totalorder %s19, 3
    %p161 = por %p159, %p160
    %p162 = scmp.ne.s32.totalorder %s153, %s154
    %p163 = scmp.eq.s32.totalorder %s19, 0
    %p164 = por %p162, %p163
    %p165 = scmp.ne.s32.totalorder %s153, %s154
    %p166 = scmp.eq.s32.totalorder %s20, 3
    %p167 = por %p165, %p166
    %p169 = scmp.ne.s32.totalorder %s154, %s168
    %p170 = scmp.eq.s32.totalorder %s20, 0
    %p171 = por %p169, %p170
    %s172 = ssub.s32 %s21, %s33
    %s173 = ssub.s32 %s22, %s29
    %s174 = sor.u32 %s172, %s173
    %p175 = scmp.eq.s32.totalorder %s174, 0
    %s177 = sadd.s32 %s176, 1
    %s178 = scalar_select %p175, %s176, %s177
    %p181 = pneg %p175
    %p182 = scmp.eq.s32.totalorder %s14, 3
    %p183 = por %p181, %p182
    %p184 = scmp.ne.s32.totalorder %s176, %s179
    %p185 = scmp.eq.s32.totalorder %s14, 0
    %p186 = por %p184, %p185
    %p187 = scmp.ne.s32.totalorder %s176, %s179
    %p188 = scmp.eq.s32.totalorder %s19, 3
    %p189 = por %p187, %p188
    %p190 = scmp.ne.s32.totalorder %s179, %s180
    %p191 = scmp.eq.s32.totalorder %s19, 0
    %p192 = por %p190, %p191
    %p193 = scmp.ne.s32.totalorder %s179, %s180
    %p194 = scmp.eq.s32.totalorder %s20, 3
    %p195 = por %p193, %p194
    %p197 = scmp.ne.s32.totalorder %s180, %s196
    %p198 = scmp.eq.s32.totalorder %s20, 0
    %p199 = por %p197, %p198
    %s200 = ssub.s32 %s21, %s33
    %p201 = scmp.eq.s32.totalorder %s200, 0
    %s203 = sadd.s32 %s202, 1
    %s204 = scalar_select %p201, %s202, %s203
    %p207 = pneg %p201
    %p208 = scmp.eq.s32.totalorder %s14, 3
    %p209 = por %p207, %p208
    %p210 = scmp.ne.s32.totalorder %s202, %s205
    %p211 = scmp.eq.s32.totalorder %s14, 0
    %p212 = por %p210, %p211
    %p213 = scmp.ne.s32.totalorder %s202, %s205
    %p214 = scmp.eq.s32.totalorder %s19, 3
    %p215 = por %p213, %p214
    %p216 = scmp.ne.s32.totalorder %s205, %s206
    %p217 = scmp.eq.s32.totalorder %s19, 0
    %p218 = por %p216, %p217
    %p219 = scmp.ne.s32.totalorder %s205, %s206
    %p220 = scmp.eq.s32.totalorder %s20, 3
    %p221 = por %p219, %p220
    %p223 = scmp.ne.s32.totalorder %s206, %s222
    %p224 = scmp.eq.s32.totalorder %s20, 0
    %p225 = por %p223, %p224
    %p226 = scmp.le.s32.totalorder 1, %s14
    %p227 = scmp.lt.s32.totalorder %s14, 5
    %p228 = pnand %p226, %p227
    %p229 = pneg %p228
    // Predicated region
    $region9: #{seg_net_forward.1} parent=5 // pred_check
      _
    $region10: #{seg_net_forward.1} parent=5 // pred_check_branch
      %231 = sbr.rel (%p228) target = $region12
    $region11: #{seg_net_forward.1} parent=5 // pred_region
      %s232 = ssub.s32 %s14, 1
      // Predicated region
      $region13: #{seg_net_forward.1} parent=11 // pred_check
        %p233 = pneg %p101
      $region14: #{seg_net_forward.1} parent=11 // pred_check_branch
        %235 = sbr.rel (%p233) target = $region16
      $region15: #{seg_net_forward.1} parent=11 // pred_region
        _
      $region16: #{seg_net_forward.1} parent=11 // pred_fallthru
        _
      // Predicated region
      $region17: #{seg_net_forward.1} parent=11 // pred_check
        %p236 = pneg %p122
      $region18: #{seg_net_forward.1} parent=11 // pred_check_branch
        %238 = sbr.rel (%p236) target = $region20
      $region19: #{seg_net_forward.1} parent=11 // pred_region
        _
      $region20: #{seg_net_forward.1} parent=11 // pred_fallthru
        _
      // Predicated region
      $region21: #{seg_net_forward.1} parent=11 // pred_check
        %p239 = pneg %p143
      $region22: #{seg_net_forward.1} parent=11 // pred_check_branch
        %241 = sbr.rel (%p239) target = $region24
      $region23: #{seg_net_forward.1} parent=11 // pred_region
        _
      $region24: #{seg_net_forward.1} parent=11 // pred_fallthru
        _
      // Predicated region
      $region25: #{seg_net_forward.1} parent=11 // pred_check
        %p242 = pneg %p164
      $region26: #{seg_net_forward.1} parent=11 // pred_check_branch
        %244 = sbr.rel (%p242) target = $region28
      $region27: #{seg_net_forward.1} parent=11 // pred_region
        _
      $region28: #{seg_net_forward.1} parent=11 // pred_fallthru
        _
    $region12: #{seg_net_forward.1} parent=5 // pred_fallthru
      _
    %p245 = scmp.lt.s32.totalorder %s14, 4
    // Predicated region
    $region29: #{seg_net_forward.1} parent=5 // pred_check
      %p246 = pneg %p245
    $region30: #{seg_net_forward.1} parent=5 // pred_check_branch
      %248 = sbr.rel (%p246) target = $region32
    $region31: #{seg_net_forward.1} parent=5 // pred_region
      // Predicated region
      $region33: #{seg_net_forward.1} parent=31 // pred_check
        %p249 = pneg %p48
      $region34: #{seg_net_forward.1} parent=31 // pred_check_branch
        %251 = sbr.rel (%p249) target = $region36
      $region35: #{seg_net_forward.1} parent=31 // pred_region
        %p252 = scmp.lt.s32.totalorder %s21, 1
        %s253 = scalar_select %p252, %s21, 1
        %p254 = scmp.lt.s32.totalorder %s22, 1
        %s255 = scalar_select %p254, %s22, 1
        %s256 = smul.addr %s253, 2
        %s257 = sadd.s32 %s255, %s256
        %s258 = smul.addr %s257, 4
        %s259 = scalar_lea.vmem %s0, %s258
      $region36: #{seg_net_forward.1} parent=31 // pred_fallthru
        _
      // Predicated region
      $region37: #{seg_net_forward.1} parent=31 // pred_check
        %p260 = pneg %p74
      $region38: #{seg_net_forward.1} parent=31 // pred_check_branch
        %262 = sbr.rel (%p260) target = $region40
      $region39: #{seg_net_forward.1} parent=31 // pred_region
        %p263 = scmp.lt.s32.totalorder %s21, 1
        %s264 = scalar_select %p263, %s21, 1
        %s265 = smul.addr %s264, 2
        %s266 = smul.addr %s265, 4
        %s267 = scalar_lea.vmem %s1, %s266
      $region40: #{seg_net_forward.1} parent=31 // pred_fallthru
        _
    $region32: #{seg_net_forward.1} parent=5 // pred_fallthru
      _
    %p268 = scmp.le.s32.totalorder 1, %s14
    %p269 = scmp.lt.s32.totalorder %s14, 5
    %p270 = pnand %p268, %p269
    %p271 = pneg %p270
    // Predicated region
    $region41: #{seg_net_forward.1} parent=5 // pred_check
      _
    $region42: #{seg_net_forward.1} parent=5 // pred_check_branch
      %273 = sbr.rel (%p270) target = $region44
    $region43: #{seg_net_forward.1} parent=5 // pred_region
      %s274 = ssub.s32 %s14, 1
      %p275 = scmp.lt.s32.totalorder %s23, 1
      %s276 = scalar_select %p275, %s23, 1
      %p277 = scmp.lt.s32.totalorder %s24, 1
      %s278 = scalar_select %p277, %s24, 1
      %s279 = smul.addr %s276, 2
      %s280 = sadd.s32 %s278, %s279
      %s281 = smul.addr %s280, 4
      %s282 = scalar_lea.vmem %s0, %s281
      %p283 = pneg %p54
      %p284 = pneg %p51
      %p285 = scmp.lt.s32.totalorder %s23, 1
      %s286 = scalar_select %p285, %s23, 1
      %s287 = smul.addr %s286, 2
      %s288 = smul.addr %s287, 4
      %s289 = scalar_lea.vmem %s1, %s288
      %p290 = pneg %p80
      %p291 = pneg %p77
      %p292 = pneg %p101
      %p293 = pneg %p98
      %p294 = pneg %p122
      %p295 = pneg %p119
      %p296 = pneg %p143
      %p297 = pneg %p140
      %p298 = pneg %p164
      %p299 = pneg %p161
      %p300 = pneg %p192
      %p301 = pneg %p189
      %p302 = scmp.lt.s32.totalorder %s23, 1
      %s303 = scalar_select %p302, %s23, 1
      %p304 = scmp.lt.s32.totalorder %s24, 1
      %s305 = scalar_select %p304, %s24, 1
      %s306 = smul.addr %s303, 2
      %s307 = sadd.s32 %s305, %s306
      %s308 = smul.addr %s307, 8
      %s309 = scalar_lea.vmem %s6, %s308
      %p310 = pneg %p218
      %p311 = pneg %p215
      %p312 = scmp.lt.s32.totalorder %s23, 1
      %s313 = scalar_select %p312, %s23, 1
      %s314 = smul.addr %s313, 2
      %s315 = smul.addr %s314, 8
      %s316 = scalar_lea.vmem %s7, %s315
      %p317 = scmp.lt.s32.totalorder %s23, 1
      %s318 = scalar_select %p317, %s23, 1
      %p319 = scmp.lt.s32.totalorder %s24, 1
      %s320 = scalar_select %p319, %s24, 1
      %s321 = smul.addr %s318, 2
      %s322 = sadd.s32 %s320, %s321
      %s323 = smul.addr %s322, 4
      %s324 = scalar_lea.vmem %s0, %s323
      %p325 = scmp.lt.s32.totalorder %s23, 1
      %s326 = scalar_select %p325, %s23, 1
      %s327 = smul.addr %s326, 2
      %s328 = smul.addr %s327, 4
      %s329 = scalar_lea.vmem %s1, %s328
      %p330 = scmp.lt.s32.totalorder %s23, 1
      %s331 = scalar_select %p330, %s23, 1
      %p332 = scmp.lt.s32.totalorder %s24, 1
      %s333 = scalar_select %p332, %s24, 1
      %s334 = smul.addr %s331, 2
      %s335 = sadd.s32 %s333, %s334
      %s336 = smul.addr %s335, 8
      %s337 = scalar_lea.vmem %s6, %s336
      %p338 = scmp.lt.s32.totalorder %s23, 1
      %s339 = scalar_select %p338, %s23, 1
      %s340 = smul.addr %s339, 2
      %s341 = smul.addr %s340, 8
      %s342 = scalar_lea.vmem %s7, %s341
      %p344 = scmp.eq.s32.totalorder %s24, 0
      // Predicated region
      $region45: #{seg_net_forward.1} parent=43 // pred_check
        %p345 = pneg %p344
      $region46: #{seg_net_forward.1} parent=43 // pred_check_branch
        %347 = sbr.rel (%p345) target = $region48
      $region47: #{seg_net_forward.1} parent=43 // pred_region
        %v348 = vld [vmem:[%s329] sm:$0x77]
        %v350 = vcombine.high %v348, %v348
        %v352 = vpack.c.bf16 %v348, %v348
        %v353 = vpack.c.bf16 %v350, %v350
        %v354 = vld [vmem:[%s5] sm:$0xf]
        %v355 = vld [vmem:[%s5 + $0x4] sm:$0xf]
        %v356 = vld [vmem:[%s5 + $0x8] sm:$0xf]
        %v357 = vld [vmem:[%s5 + $0xc] sm:$0xf]
        %v358 = vld [vmem:[%s5 + $0x10] sm:$0xf]
        %v359 = vld [vmem:[%s5 + $0x14] sm:$0xf]
        %v360 = vld [vmem:[%s5 + $0x18] sm:$0xf]
        %v361 = vld [vmem:[%s5 + $0x1c] sm:$0xf]
        %v362 = vld [vmem:[%s4] sm:$0xff]
        %v363 = vld [vmem:[%s4 + $0x8] sm:$0xff]
        %v364 = vld [vmem:[%s4 + $0x10] sm:$0xff]
        %v365 = vld [vmem:[%s4 + $0x18] sm:$0xff]
        %v366 = vld [vmem:[%s4 + $0x20] sm:$0xff]
        %v367 = vld [vmem:[%s4 + $0x28] sm:$0xff]
        %v368 = vld [vmem:[%s4 + $0x30] sm:$0xff]
        %v369 = vld [vmem:[%s4 + $0x38] sm:$0xff]
        %371 = vset.pattern.permute.xlu0 0
        %372 = vperm.xlu0 %371, %v362
        %v373 = vpop.permute.xlu0 %372
        %376 = vset.pattern.permute.xlu0 0
        %377 = vperm.xlu0 %376, %v363
        %v378 = vpop.permute.xlu0 %377
        %381 = vset.pattern.permute.xlu0 0
        %382 = vperm.xlu0 %381, %v364
        %v383 = vpop.permute.xlu0 %382
        %386 = vset.pattern.permute.xlu0 0
        %387 = vperm.xlu0 %386, %v365
        %v388 = vpop.permute.xlu0 %387
        %391 = vset.pattern.permute.xlu0 0
        %392 = vperm.xlu0 %391, %v366
        %v393 = vpop.permute.xlu0 %392
        %396 = vset.pattern.permute.xlu0 0
        %397 = vperm.xlu0 %396, %v367
        %v398 = vpop.permute.xlu0 %397
        %401 = vset.pattern.permute.xlu0 0
        %402 = vperm.xlu0 %401, %v368
        %v403 = vpop.permute.xlu0 %402
        %406 = vset.pattern.permute.xlu0 0
        %407 = vperm.xlu0 %406, %v369
        %v408 = vpop.permute.xlu0 %407
        %v418 = vunpack.c.l.b16 %v354
        %v419 = vunpack.c.l.b16 %v355
        %v420 = vunpack.c.l.b16 %v356
        %v421 = vunpack.c.l.b16 %v357
        %v422 = vunpack.c.l.b16 %v358
        %v423 = vunpack.c.l.b16 %v359
        %v424 = vunpack.c.l.b16 %v360
        %v425 = vunpack.c.l.b16 %v361
        %v426 = vpack.c.b16 %v419, %v418
        %v427 = vpack.c.b16 %v421, %v420
        %v428 = vpack.c.b16 %v423, %v422
        %v429 = vpack.c.b16 %v425, %v424
        %vm430 = vcmask 23552
        %v432 = vsel %vm430, %v426, 0
        %v435 = vsel %vm430, %v427, 0
        %v438 = vsel %vm430, %v428, 0
        %v441 = vsel %vm430, %v429, 0
        %vm443 = vcmask 1040384
        %vm444 = vcmask 1041408
        %v445 = vsel %vm443, 4294967295, 65535
        %v446 = vsel %vm444, %v445, 0
        %v448 = vand.u32 %v352, %v446
        %v451 = vand.u32 %v353, %v446
        %453 = vmatprep.subr.bf16.mxu0 %v451
        %454 = vmatpush1.bf16.msra.mxu0 %v448
        %455 = vmatprep.subr.bf16.mxu0 0
        %456 = vmatpush1.bf16.msra.mxu0 0
        %457 = vmatprep.subr.bf16.mxu0 0
        %458 = vmatpush1.bf16.msra.mxu0 0
        %459 = vmatprep.subr.bf16.mxu0 0
        %460 = vmatpush1.bf16.msra.mxu0 0
        %461 = vmatprep.subr.bf16.mxu0 0
        %462 = vmatpush1.bf16.msra.mxu0 0
        %463 = vmatprep.subr.bf16.mxu0 0
        %464 = vmatpush1.bf16.msra.mxu0 0
        %465 = vmatprep.subr.bf16.mxu0 0
        %466 = vmatpush1.bf16.msra.mxu0 0
        %467 = vmatprep.subr.bf16.mxu0 0
        %468 = vmatpush1.bf16.msra.mxu0 0
        %469 = vmatprep.subr.bf16.mxu0 0
        %470 = vmatpush1.bf16.msra.mxu0 0
        %471 = vmatprep.subr.bf16.mxu0 0
        %472 = vmatpush1.bf16.msra.mxu0 0
        %473 = vmatprep.subr.bf16.mxu0 0
        %474 = vmatpush1.bf16.msra.mxu0 0
        %475 = vmatprep.subr.bf16.mxu0 0
        %476 = vmatpush1.bf16.msra.mxu0 0
        %477 = vmatprep.subr.bf16.mxu0 0
        %478 = vmatpush1.bf16.msra.mxu0 0
        %479 = vmatprep.subr.bf16.mxu0 0
        %480 = vmatpush1.bf16.msra.mxu0 0
        %481 = vmatprep.subr.bf16.mxu0 0
        %482 = vmatpush1.bf16.msra.mxu0 0
        %483 = vmatprep.subr.bf16.mxu0 0
        %484 = vmatpush1.bf16.msra.mxu0 0
        %485 = vmatprep.mubr.bf16.mxu0 0
        %486 = vmatmul.mubr.bf16.gmra.mrb[0].mxu0 %v432
        %v487 = vpop.f32.mrb[0].mxu0
        %v488 = vadd.f32 %v373, %v487
        %v489 = vpop.f32.mrb[0].mxu0
        %v490 = vadd.f32 %v373, %v489
        %v491 = vpop.f32.mrb[0].mxu0
        %v492 = vadd.f32 %v378, %v491
        %v493 = vpop.f32.mrb[0].mxu0
        %v494 = vadd.f32 %v378, %v493
        %495 = vmatprep.mubr.bf16.mxu0 0
        %496 = vmatmul.mubr.bf16.gmra.mrb[0].mxu0 %v435
        %v497 = vpop.f32.mrb[0].mxu0
        %v498 = vadd.f32 %v383, %v497
        %v499 = vpop.f32.mrb[0].mxu0
        %v500 = vadd.f32 %v383, %v499
        %v501 = vpop.f32.mrb[0].mxu0
        %v502 = vadd.f32 %v388, %v501
        %v503 = vpop.f32.mrb[0].mxu0
        %v504 = vadd.f32 %v388, %v503
        %505 = vmatprep.mubr.bf16.mxu0 0
        %506 = vmatmul.mubr.bf16.gmra.mrb[0].mxu0 %v438
        %v507 = vpop.f32.mrb[0].mxu0
        %v508 = vadd.f32 %v393, %v507
        %v509 = vpop.f32.mrb[0].mxu0
        %v510 = vadd.f32 %v393, %v509
        %v511 = vpop.f32.mrb[0].mxu0
        %v512 = vadd.f32 %v398, %v511
        %v513 = vpop.f32.mrb[0].mxu0
        %v514 = vadd.f32 %v398, %v513
        %515 = vmatprep.mubr.bf16.mxu0 0
        %516 = vmatmul.mubr.bf16.gmra.mrb[0].mxu0 %v441
        %v517 = vpop.f32.mrb[0].mxu0
        %v518 = vadd.f32 %v403, %v517
        %v519 = vpop.f32.mrb[0].mxu0
        %v520 = vadd.f32 %v403, %v519
        %v521 = vpop.f32.mrb[0].mxu0
        %v522 = vadd.f32 %v408, %v521
        %v523 = vpop.f32.mrb[0].mxu0
        %v524 = vadd.f32 %v408, %v523
        %525 = vdwg.mxu0
        %v526 = vmax.f32 %v488, 0.0
        %v527 = vmax.f32 %v490, 0.0
        %v528 = vmax.f32 %v492, 0.0
        %v529 = vmax.f32 %v494, 0.0
        %v530 = vmax.f32 %v498, 0.0
        %v531 = vmax.f32 %v500, 0.0
        %v532 = vmax.f32 %v502, 0.0
        %v533 = vmax.f32 %v504, 0.0
        %v534 = vmax.f32 %v508, 0.0
        %v535 = vmax.f32 %v510, 0.0
        %v536 = vmax.f32 %v512, 0.0
        %v537 = vmax.f32 %v514, 0.0
        %v538 = vmax.f32 %v518, 0.0
        %v539 = vmax.f32 %v520, 0.0
        %v540 = vmax.f32 %v522, 0.0
        %v541 = vmax.f32 %v524, 0.0
        %v542 = vld [vmem:[%s5 + $0x20] sm:$0xf]
        %v543 = vld [vmem:[%s5 + $0x24] sm:$0xf]
        %v544 = vld [vmem:[%s5 + $0x28] sm:$0xf]
        %v545 = vld [vmem:[%s5 + $0x2c] sm:$0xf]
        %v546 = vld [vmem:[%s5 + $0x30] sm:$0xf]
        %v547 = vld [vmem:[%s5 + $0x34] sm:$0xf]
        %v548 = vld [vmem:[%s5 + $0x38] sm:$0xf]
        %v549 = vld [vmem:[%s5 + $0x3c] sm:$0xf]
        %v550 = vld [vmem:[%s4 + $0x40] sm:$0xff]
        %v551 = vld [vmem:[%s4 + $0x48] sm:$0xff]
        %v552 = vld [vmem:[%s4 + $0x50] sm:$0xff]
        %v553 = vld [vmem:[%s4 + $0x58] sm:$0xff]
        %v554 = vld [vmem:[%s4 + $0x60] sm:$0xff]
        %v555 = vld [vmem:[%s4 + $0x68] sm:$0xff]
        %v556 = vld [vmem:[%s4 + $0x70] sm:$0xff]
        %v557 = vld [vmem:[%s4 + $0x78] sm:$0xff]
        %v558 = vpack.c.bf16 %v528, %v526
        %v559 = vpack.c.bf16 %v529, %v527
        %v560 = vpack.c.bf16 %v532, %v530
        %v561 = vpack.c.bf16 %v533, %v531
        %v562 = vpack.c.bf16 %v536, %v534
        %v563 = vpack.c.bf16 %v537, %v535
        %v564 = vpack.c.bf16 %v540, %v538
        %v565 = vpack.c.bf16 %v541, %v539
        %567 = vset.pattern.permute.xlu0 0
        %568 = vperm.xlu0 %567, %v550
        %v569 = vpop.permute.xlu0 %568
        %572 = vset.pattern.permute.xlu0 0
        %573 = vperm.xlu0 %572, %v551
        %v574 = vpop.permute.xlu0 %573
        %577 = vset.pattern.permute.xlu0 0
        %578 = vperm.xlu0 %577, %v552
        %v579 = vpop.permute.xlu0 %578
        %582 = vset.pattern.permute.xlu0 0
        %583 = vperm.xlu0 %582, %v553
        %v584 = vpop.permute.xlu0 %583
        %587 = vset.pattern.permute.xlu0 0
        %588 = vperm.xlu0 %587, %v554
        %v589 = vpop.permute.xlu0 %588
        %592 = vset.pattern.permute.xlu0 0
        %593 = vperm.xlu0 %592, %v555
        %v594 = vpop.permute.xlu0 %593
        %597 = vset.pattern.permute.xlu0 0
        %598 = vperm.xlu0 %597, %v556
        %v599 = vpop.permute.xlu0 %598
        %602 = vset.pattern.permute.xlu0 0
        %603 = vperm.xlu0 %602, %v557
        %v604 = vpop.permute.xlu0 %603
        %v614 = vunpack.c.l.b16 %v542
        %v615 = vunpack.c.l.b16 %v543
        %v616 = vunpack.c.l.b16 %v544
        %v617 = vunpack.c.l.b16 %v545
        %v618 = vunpack.c.l.b16 %v546
        %v619 = vunpack.c.l.b16 %v547
        %v620 = vunpack.c.l.b16 %v548
        %v621 = vunpack.c.l.b16 %v549
        %v622 = vpack.c.b16 %v615, %v614
        %v623 = vpack.c.b16 %v617, %v616
        %v624 = vpack.c.b16 %v619, %v618
        %v625 = vpack.c.b16 %v621, %v620
        %vm626 = vcmask 523264
        %v628 = vsel %vm626, %v622, 0
        %v631 = vsel %vm626, %v623, 0
        %v634 = vsel %vm626, %v624, 0
        %v637 = vsel %vm626, %v625, 0
        %639 = vmatprep.subr.bf16.mxu0 %v559
        %640 = vmatpush1.bf16.msra.mxu0 %v558
        %641 = vmatprep.subr.bf16.mxu0 %v561
        %642 = vmatpush1.bf16.msra.mxu0 %v560
        %643 = vmatprep.subr.bf16.mxu0 %v563
        %644 = vmatpush1.bf16.msra.mxu0 %v562
        %645 = vmatprep.subr.bf16.mxu0 %v565
        %646 = vmatpush1.bf16.msra.mxu0 %v564
        %647 = vmatprep.subr.bf16.mxu0 0
        %648 = vmatpush1.bf16.msra.mxu0 0
        %649 = vmatprep.subr.bf16.mxu0 0
        %650 = vmatpush1.bf16.msra.mxu0 0
        %651 = vmatprep.subr.bf16.mxu0 0
        %652 = vmatpush1.bf16.msra.mxu0 0
        %653 = vmatprep.subr.bf16.mxu0 0
        %654 = vmatpush1.bf16.msra.mxu0 0
        %655 = vmatprep.subr.bf16.mxu0 0
        %656 = vmatpush1.bf16.msra.mxu0 0
        %657 = vmatprep.subr.bf16.mxu0 0
        %658 = vmatpush1.bf16.msra.mxu0 0
        %659 = vmatprep.subr.bf16.mxu0 0
        %660 = vmatpush1.bf16.msra.mxu0 0
        %661 = vmatprep.subr.bf16.mxu0 0
        %662 = vmatpush1.bf16.msra.mxu0 0
        %663 = vmatprep.subr.bf16.mxu0 0
        %664 = vmatpush1.bf16.msra.mxu0 0
        %665 = vmatprep.subr.bf16.mxu0 0
        %666 = vmatpush1.bf16.msra.mxu0 0
        %667 = vmatprep.subr.bf16.mxu0 0
        %668 = vmatpush1.bf16.msra.mxu0 0
        %669 = vmatprep.subr.bf16.mxu0 0
        %670 = vmatpush1.bf16.msra.mxu0 0
        %671 = vmatprep.mubr.bf16.mxu0 0
        %672 = vmatmul.mubr.bf16.gmra.mrb[0].mxu0 %v628
        %v673 = vpop.f32.mrb[0].mxu0
        %v674 = vadd.f32 %v569, %v673
        %v675 = vpop.f32.mrb[0].mxu0
        %v676 = vadd.f32 %v569, %v675
        %v677 = vpop.f32.mrb[0].mxu0
        %v678 = vadd.f32 %v574, %v677
        %v679 = vpop.f32.mrb[0].mxu0
        %v680 = vadd.f32 %v574, %v679
        %681 = vmatprep.mubr.bf16.mxu0 0
        %682 = vmatmul.mubr.bf16.gmra.mrb[0].mxu0 %v631
        %v683 = vpop.f32.mrb[0].mxu0
        %v684 = vadd.f32 %v579, %v683
        %v685 = vpop.f32.mrb[0].mxu0
        %v686 = vadd.f32 %v579, %v685
        %v687 = vpop.f32.mrb[0].mxu0
        %v688 = vadd.f32 %v584, %v687
        %v689 = vpop.f32.mrb[0].mxu0
        %v690 = vadd.f32 %v584, %v689
        %691 = vmatprep.mubr.bf16.mxu0 0
        %692 = vmatmul.mubr.bf16.gmra.mrb[0].mxu0 %v634
        %v693 = vpop.f32.mrb[0].mxu0
        %v694 = vadd.f32 %v589, %v693
        %v695 = vpop.f32.mrb[0].mxu0
        %v696 = vadd.f32 %v589, %v695
        %v697 = vpop.f32.mrb[0].mxu0
        %v698 = vadd.f32 %v594, %v697
        %v699 = vpop.f32.mrb[0].mxu0
        %v700 = vadd.f32 %v594, %v699
        %701 = vmatprep.mubr.bf16.mxu0 0
        %702 = vmatmul.mubr.bf16.gmra.mrb[0].mxu0 %v637
        %v703 = vpop.f32.mrb[0].mxu0
        %v704 = vadd.f32 %v599, %v703
        %v705 = vpop.f32.mrb[0].mxu0
        %v706 = vadd.f32 %v599, %v705
        %v707 = vpop.f32.mrb[0].mxu0
        %v708 = vadd.f32 %v604, %v707
        %v709 = vpop.f32.mrb[0].mxu0
        %v710 = vadd.f32 %v604, %v709
        %711 = vdwg.mxu0
        %v712 = vpack.c.bf16 %v678, %v674
        %v713 = vpack.c.bf16 %v680, %v676
        %v714 = vpack.c.bf16 %v688, %v684
        %v715 = vpack.c.bf16 %v690, %v686
        %v716 = vpack.c.bf16 %v698, %v694
        %v717 = vpack.c.bf16 %v700, %v696
        %v718 = vpack.c.bf16 %v708, %v704
        %v719 = vpack.c.bf16 %v710, %v706
        %720 = vst [vmem:[#allocation2] sm:$0xff] %v712
        %721 = vst [vmem:[#allocation2 + $0x8] sm:$0xff] %v713
        %722 = vst [vmem:[#allocation2 + $0x10] sm:$0xff] %v714
        %723 = vst [vmem:[#allocation2 + $0x18] sm:$0xff] %v715
        %724 = vst [vmem:[#allocation2 + $0x20] sm:$0xff] %v716
        %725 = vst [vmem:[#allocation2 + $0x28] sm:$0xff] %v717
        %726 = vst [vmem:[#allocation2 + $0x30] sm:$0xff] %v718
        %727 = vst [vmem:[#allocation2 + $0x38] sm:$0xff] %v719
        %728 = vst [vmem:[#allocation3] sm:$0xff] 0.0
        %729 = vst [vmem:[#allocation3 + $0x8] sm:$0xff] 0.0
      $region48: #{seg_net_forward.1} parent=43 // pred_fallthru
        _
      %v730 = vld [vmem:[%s324] sm:$0x7]
      %v731 = vpack.c.bf16 %v730, %v730
      %v732 = vld [vmem:[%s3] sm:$0xf]
      %v733 = vld [vmem:[%s3 + $0x4] sm:$0xf]
      %v734 = vld [vmem:[%s3 + $0x8] sm:$0xf]
      %v735 = vld [vmem:[%s3 + $0xc] sm:$0xf]
      %v736 = vld [vmem:[%s3 + $0x10] sm:$0xf]
      %v737 = vld [vmem:[%s3 + $0x14] sm:$0xf]
      %v738 = vld [vmem:[%s3 + $0x18] sm:$0xf]
      %v739 = vld [vmem:[%s3 + $0x1c] sm:$0xf]
      %v740 = vld [vmem:[%s2] sm:$0xff]
      %v741 = vld [vmem:[%s2 + $0x8] sm:$0xff]
      %v742 = vld [vmem:[%s2 + $0x10] sm:$0xff]
      %v743 = vld [vmem:[%s2 + $0x18] sm:$0xff]
      %v744 = vld [vmem:[%s2 + $0x20] sm:$0xff]
      %v745 = vld [vmem:[%s2 + $0x28] sm:$0xff]
      %v746 = vld [vmem:[%s2 + $0x30] sm:$0xff]
      %v747 = vld [vmem:[%s2 + $0x38] sm:$0xff]
      %749 = vset.pattern.permute.xlu0 0
      %750 = vperm.xlu0 %749, %v740
      %v751 = vpop.permute.xlu0 %750
      %754 = vset.pattern.permute.xlu0 0
      %755 = vperm.xlu0 %754, %v741
      %v756 = vpop.permute.xlu0 %755
      %759 = vset.pattern.permute.xlu0 0
      %760 = vperm.xlu0 %759, %v742
      %v761 = vpop.permute.xlu0 %760
      %764 = vset.pattern.permute.xlu0 0
      %765 = vperm.xlu0 %764, %v743
      %v766 = vpop.permute.xlu0 %765
      %769 = vset.pattern.permute.xlu0 0
      %770 = vperm.xlu0 %769, %v744
      %v771 = vpop.permute.xlu0 %770
      %774 = vset.pattern.permute.xlu0 0
      %775 = vperm.xlu0 %774, %v745
      %v776 = vpop.permute.xlu0 %775
      %779 = vset.pattern.permute.xlu0 0
      %780 = vperm.xlu0 %779, %v746
      %v781 = vpop.permute.xlu0 %780
      %784 = vset.pattern.permute.xlu0 0
      %785 = vperm.xlu0 %784, %v747
      %v786 = vpop.permute.xlu0 %785
      %v796 = vunpack.c.l.b16 %v732
      %v797 = vunpack.c.l.b16 %v733
      %v798 = vunpack.c.l.b16 %v734
      %v799 = vunpack.c.l.b16 %v735
      %v800 = vunpack.c.l.b16 %v736
      %v801 = vunpack.c.l.b16 %v737
      %v802 = vunpack.c.l.b16 %v738
      %v803 = vunpack.c.l.b16 %v739
      %v804 = vpack.c.b16 %v797, %v796
      %v805 = vpack.c.b16 %v799, %v798
      %v806 = vpack.c.b16 %v801, %v800
      %v807 = vpack.c.b16 %v803, %v802
      %vm808 = vcmask 23552
      %v810 = vsel %vm808, %v804, 0
      %v813 = vsel %vm808, %v805, 0
      %v816 = vsel %vm808, %v806, 0
      %v819 = vsel %vm808, %v807, 0
      %vm821 = vcmask 1040384
      %vm822 = vcmask 1041408
      %v823 = vsel %vm821, 4294967295, 65535
      %v824 = vsel %vm822, %v823, 0
      %v826 = vand.u32 %v731, %v824
      %828 = vmatprep.subr.bf16.mxu0 0
      %829 = vmatpush1.bf16.msra.mxu0 %v826
      %830 = vmatprep.subr.bf16.mxu0 0
      %831 = vmatpush1.bf16.msra.mxu0 0
      %832 = vmatprep.subr.bf16.mxu0 0
      %833 = vmatpush1.bf16.msra.mxu0 0
      %834 = vmatprep.subr.bf16.mxu0 0
      %835 = vmatpush1.bf16.msra.mxu0 0
      %836 = vmatprep.subr.bf16.mxu0 0
      %837 = vmatpush1.bf16.msra.mxu0 0
      %838 = vmatprep.subr.bf16.mxu0 0
      %839 = vmatpush1.bf16.msra.mxu0 0
      %840 = vmatprep.subr.bf16.mxu0 0
      %841 = vmatpush1.bf16.msra.mxu0 0
      %842 = vmatprep.subr.bf16.mxu0 0
      %843 = vmatpush1.bf16.msra.mxu0 0
      %844 = vmatprep.subr.bf16.mxu0 0
      %845 = vmatpush1.bf16.msra.mxu0 0
      %846 = vmatprep.subr.bf16.mxu0 0
      %847 = vmatpush1.bf16.msra.mxu0 0
      %848 = vmatprep.subr.bf16.mxu0 0
      %849 = vmatpush1.bf16.msra.mxu0 0
      %850 = vmatprep.subr.bf16.mxu0 0
      %851 = vmatpush1.bf16.msra.mxu0 0
      %852 = vmatprep.subr.bf16.mxu0 0
      %853 = vmatpush1.bf16.msra.mxu0 0
      %854 = vmatprep.subr.bf16.mxu0 0
      %855 = vmatpush1.bf16.msra.mxu0 0
      %856 = vmatprep.subr.bf16.mxu0 0
      %857 = vmatpush1.bf16.msra.mxu0 0
      %858 = vmatprep.subr.bf16.mxu0 0
      %859 = vmatpush1.bf16.msra.mxu0 0
      %860 = vmatprep.mubr.bf16.mxu0 0
      %861 = vmatmul.mubr.bf16.gmra.mrb[0].mxu0 %v810
      %v862 = vpop.f32.mrb[0].mxu0
      %v863 = vadd.f32 %v751, %v862
      %v864 = vpop.f32.mrb[0].mxu0
      %v865 = vpop.f32.mrb[0].mxu0
      %v866 = vadd.f32 %v756, %v865
      %v867 = vpop.f32.mrb[0].mxu0
      %868 = vmatprep.mubr.bf16.mxu0 0
      %869 = vmatmul.mubr.bf16.gmra.mrb[0].mxu0 %v813
      %v870 = vpop.f32.mrb[0].mxu0
      %v871 = vadd.f32 %v761, %v870
      %v872 = vpop.f32.mrb[0].mxu0
      %v873 = vpop.f32.mrb[0].mxu0
      %v874 = vadd.f32 %v766, %v873
      %v875 = vpop.f32.mrb[0].mxu0
      %876 = vmatprep.mubr.bf16.mxu0 0
      %877 = vmatmul.mubr.bf16.gmra.mrb[0].mxu0 %v816
      %v878 = vpop.f32.mrb[0].mxu0
      %v879 = vadd.f32 %v771, %v878
      %v880 = vpop.f32.mrb[0].mxu0
      %v881 = vpop.f32.mrb[0].mxu0
      %v882 = vadd.f32 %v776, %v881
      %v883 = vpop.f32.mrb[0].mxu0
      %884 = vmatprep.mubr.bf16.mxu0 0
      %885 = vmatmul.mubr.bf16.gmra.mrb[0].mxu0 %v819
      %v886 = vpop.f32.mrb[0].mxu0
      %v887 = vadd.f32 %v781, %v886
      %v888 = vpop.f32.mrb[0].mxu0
      %v889 = vpop.f32.mrb[0].mxu0
      %v890 = vadd.f32 %v786, %v889
      %v891 = vpop.f32.mrb[0].mxu0
      %892 = vdwg.mxu0
      %v893 = vmax.f32 %v863, 0.0
      %v894 = vmax.f32 %v866, 0.0
      %v895 = vmax.f32 %v871, 0.0
      %v896 = vmax.f32 %v874, 0.0
      %v897 = vmax.f32 %v879, 0.0
      %v898 = vmax.f32 %v882, 0.0
      %v899 = vmax.f32 %v887, 0.0
      %v900 = vmax.f32 %v890, 0.0
      %v901 = vld [vmem:[%s3 + $0x20] sm:$0xf]
      %v902 = vld [vmem:[%s3 + $0x24] sm:$0xf]
      %v903 = vld [vmem:[%s3 + $0x28] sm:$0xf]
      %v904 = vld [vmem:[%s3 + $0x2c] sm:$0xf]
      %v905 = vld [vmem:[%s3 + $0x30] sm:$0xf]
      %v906 = vld [vmem:[%s3 + $0x34] sm:$0xf]
      %v907 = vld [vmem:[%s3 + $0x38] sm:$0xf]
      %v908 = vld [vmem:[%s3 + $0x3c] sm:$0xf]
      %v909 = vld [vmem:[%s2 + $0x40] sm:$0xff]
      %v910 = vld [vmem:[%s2 + $0x48] sm:$0xff]
      %v911 = vld [vmem:[%s2 + $0x50] sm:$0xff]
      %v912 = vld [vmem:[%s2 + $0x58] sm:$0xff]
      %v913 = vld [vmem:[%s2 + $0x60] sm:$0xff]
      %v914 = vld [vmem:[%s2 + $0x68] sm:$0xff]
      %v915 = vld [vmem:[%s2 + $0x70] sm:$0xff]
      %v916 = vld [vmem:[%s2 + $0x78] sm:$0xff]
      %v917 = vpack.c.bf16 %v894, %v893
      %v918 = vpack.c.bf16 %v896, %v895
      %v919 = vpack.c.bf16 %v898, %v897
      %v920 = vpack.c.bf16 %v900, %v899
      %922 = vset.pattern.permute.xlu0 0
      %923 = vperm.xlu0 %922, %v909
      %v924 = vpop.permute.xlu0 %923
      %927 = vset.pattern.permute.xlu0 0
      %928 = vperm.xlu0 %927, %v910
      %v929 = vpop.permute.xlu0 %928
      %932 = vset.pattern.permute.xlu0 0
      %933 = vperm.xlu0 %932, %v911
      %v934 = vpop.permute.xlu0 %933
      %937 = vset.pattern.permute.xlu0 0
      %938 = vperm.xlu0 %937, %v912
      %v939 = vpop.permute.xlu0 %938
      %942 = vset.pattern.permute.xlu0 0
      %943 = vperm.xlu0 %942, %v913
      %v944 = vpop.permute.xlu0 %943
      %947 = vset.pattern.permute.xlu0 0
      %948 = vperm.xlu0 %947, %v914
      %v949 = vpop.permute.xlu0 %948
      %952 = vset.pattern.permute.xlu0 0
      %953 = vperm.xlu0 %952, %v915
      %v954 = vpop.permute.xlu0 %953
      %957 = vset.pattern.permute.xlu0 0
      %958 = vperm.xlu0 %957, %v916
      %v959 = vpop.permute.xlu0 %958
      %v969 = vunpack.c.l.b16 %v901
      %v970 = vunpack.c.l.b16 %v902
      %v971 = vunpack.c.l.b16 %v903
      %v972 = vunpack.c.l.b16 %v904
      %v973 = vunpack.c.l.b16 %v905
      %v974 = vunpack.c.l.b16 %v906
      %v975 = vunpack.c.l.b16 %v907
      %v976 = vunpack.c.l.b16 %v908
      %v977 = vpack.c.b16 %v970, %v969
      %v978 = vpack.c.b16 %v972, %v971
      %v979 = vpack.c.b16 %v974, %v973
      %v980 = vpack.c.b16 %v976, %v975
      %vm981 = vcmask 523264
      %v983 = vsel %vm981, %v977, 0
      %v986 = vsel %vm981, %v978, 0
      %v989 = vsel %vm981, %v979, 0
      %v992 = vsel %vm981, %v980, 0
      %994 = vmatprep.subr.bf16.mxu0 0
      %995 = vmatpush1.bf16.msra.mxu0 %v917
      %996 = vmatprep.subr.bf16.mxu0 0
      %997 = vmatpush1.bf16.msra.mxu0 %v918
      %998 = vmatprep.subr.bf16.mxu0 0
      %999 = vmatpush1.bf16.msra.mxu0 %v919
      %1000 = vmatprep.subr.bf16.mxu0 0
      %1001 = vmatpush1.bf16.msra.mxu0 %v920
      %1002 = vmatprep.subr.bf16.mxu0 0
      %1003 = vmatpush1.bf16.msra.mxu0 0
      %1004 = vmatprep.subr.bf16.mxu0 0
      %1005 = vmatpush1.bf16.msra.mxu0 0
      %1006 = vmatprep.subr.bf16.mxu0 0
      %1007 = vmatpush1.bf16.msra.mxu0 0
      %1008 = vmatprep.subr.bf16.mxu0 0
      %1009 = vmatpush1.bf16.msra.mxu0 0
      %1010 = vmatprep.subr.bf16.mxu0 0
      %1011 = vmatpush1.bf16.msra.mxu0 0
      %1012 = vmatprep.subr.bf16.mxu0 0
      %1013 = vmatpush1.bf16.msra.mxu0 0
      %1014 = vmatprep.subr.bf16.mxu0 0
      %1015 = vmatpush1.bf16.msra.mxu0 0
      %1016 = vmatprep.subr.bf16.mxu0 0
      %1017 = vmatpush1.bf16.msra.mxu0 0
      %1018 = vmatprep.subr.bf16.mxu0 0
      %1019 = vmatpush1.bf16.msra.mxu0 0
      %1020 = vmatprep.subr.bf16.mxu0 0
      %1021 = vmatpush1.bf16.msra.mxu0 0
      %1022 = vmatprep.subr.bf16.mxu0 0
      %1023 = vmatpush1.bf16.msra.mxu0 0
      %1024 = vmatprep.subr.bf16.mxu0 0
      %1025 = vmatpush1.bf16.msra.mxu0 0
      %1026 = vmatprep.mubr.bf16.mxu0 0
      %1027 = vmatmul.mubr.bf16.gmra.mrb[0].mxu0 %v983
      %v1028 = vpop.f32.mrb[0].mxu0
      %v1029 = vadd.f32 %v924, %v1028
      %v1030 = vpop.f32.mrb[0].mxu0
      %v1031 = vpop.f32.mrb[0].mxu0
      %v1032 = vadd.f32 %v929, %v1031
      %v1033 = vpop.f32.mrb[0].mxu0
      %1034 = vmatprep.mubr.bf16.mxu0 0
      %1035 = vmatmul.mubr.bf16.gmra.mrb[0].mxu0 %v986
      %v1036 = vpop.f32.mrb[0].mxu0
      %v1037 = vadd.f32 %v934, %v1036
      %v1038 = vpop.f32.mrb[0].mxu0
      %v1039 = vpop.f32.mrb[0].mxu0
      %v1040 = vadd.f32 %v939, %v1039
      %v1041 = vpop.f32.mrb[0].mxu0
      %1042 = vmatprep.mubr.bf16.mxu0 0
      %1043 = vmatmul.mubr.bf16.gmra.mrb[0].mxu0 %v989
      %v1044 = vpop.f32.mrb[0].mxu0
      %v1045 = vadd.f32 %v944, %v1044
      %v1046 = vpop.f32.mrb[0].mxu0
      %v1047 = vpop.f32.mrb[0].mxu0
      %v1048 = vadd.f32 %v949, %v1047
      %v1049 = vpop.f32.mrb[0].mxu0
      %1050 = vmatprep.mubr.bf16.mxu0 0
      %1051 = vmatmul.mubr.bf16.gmra.mrb[0].mxu0 %v992
      %v1052 = vpop.f32.mrb[0].mxu0
      %v1053 = vadd.f32 %v954, %v1052
      %v1054 = vpop.f32.mrb[0].mxu0
      %v1055 = vpop.f32.mrb[0].mxu0
      %v1056 = vadd.f32 %v959, %v1055
      %v1057 = vpop.f32.mrb[0].mxu0
      %1058 = vdwg.mxu0
      %v1059 = vpack.c.bf16 %v1032, %v1029
      %v1060 = vpack.c.bf16 %v1040, %v1037
      %v1061 = vpack.c.bf16 %v1048, %v1045
      %v1062 = vpack.c.bf16 %v1056, %v1053
      %v1063 = vld [vmem:[#allocation2 + $0x20] sm:$0xff]
      %v1064 = vld [vmem:[#allocation2 + $0x28] sm:$0xff]
      %v1065 = vld [vmem:[#allocation2 + $0x30] sm:$0xff]
      %v1066 = vld [vmem:[#allocation2 + $0x38] sm:$0xff]
      %1067 = vxpose.xlu0.c.b16.start [1/8] %v1061, 128
      %1068 = vxpose.xlu0.c.b16.cont [2/8] %v1062, 128
      %1069 = vxpose.xlu0.c.b16.cont [3/8] 0, 128
      %1070 = vxpose.xlu0.c.b16.cont [4/8] 0, 128
      %1071 = vxpose.xlu0.c.b16.cont [5/8] 0, 128
      %1072 = vxpose.xlu0.c.b16.cont [6/8] 0, 128
      %1073 = vxpose.xlu0.c.b16.cont [7/8] 0, 128
      %1074 = vxpose.xlu0.c.b16.end [8/8] 0, 128
      %v1075 = vpop.trf.xlu0
      %v1076 = vpop.trf.xlu0
      %v1077 = vpop.trf.xlu0
      %v1078 = vpop.trf.xlu0
      %v1079 = vpop.trf.xlu0
      %v1080 = vpop.trf.xlu0
      %v1081 = vpop.trf.xlu0
      %v1082 = vpop.trf.xlu0
      %vm1083 = vcmask 261120
      %v1085 = vsel %vm1083, %v1075, 0
      %v1088 = vsel %vm1083, %v1076, 0
      %v1091 = vsel %vm1083, %v1077, 0
      %v1094 = vsel %vm1083, %v1078, 0
      %v1097 = vsel %vm1083, %v1079, 0
      %v1100 = vsel %vm1083, %v1080, 0
      %v1103 = vsel %vm1083, %v1081, 0
      %v1106 = vsel %vm1083, %v1082, 0
      %1108 = vmatprep.subr.bf16.mxu0 %v1064
      %1109 = vmatpush1.bf16.msra.mxu0 %v1063
      %1110 = vmatprep.subr.bf16.mxu0 %v1066
      %1111 = vmatpush1.bf16.msra.mxu0 %v1065
      %1112 = vmatprep.subr.bf16.mxu0 0
      %1113 = vmatpush1.bf16.msra.mxu0 0
      %1114 = vmatprep.subr.bf16.mxu0 0
      %1115 = vmatpush1.bf16.msra.mxu0 0
      %1116 = vmatprep.subr.bf16.mxu0 0
      %1117 = vmatpush1.bf16.msra.mxu0 0
      %1118 = vmatprep.subr.bf16.mxu0 0
      %1119 = vmatpush1.bf16.msra.mxu0 0
      %1120 = vmatprep.subr.bf16.mxu0 0
      %1121 = vmatpush1.bf16.msra.mxu0 0
      %1122 = vmatprep.subr.bf16.mxu0 0
      %1123 = vmatpush1.bf16.msra.mxu0 0
      %1124 = vmatprep.subr.bf16.mxu0 0
      %1125 = vmatpush1.bf16.msra.mxu0 0
      %1126 = vmatprep.subr.bf16.mxu0 0
      %1127 = vmatpush1.bf16.msra.mxu0 0
      %1128 = vmatprep.subr.bf16.mxu0 0
      %1129 = vmatpush1.bf16.msra.mxu0 0
      %1130 = vmatprep.subr.bf16.mxu0 0
      %1131 = vmatpush1.bf16.msra.mxu0 0
      %1132 = vmatprep.subr.bf16.mxu0 0
      %1133 = vmatpush1.bf16.msra.mxu0 0
      %1134 = vmatprep.subr.bf16.mxu0 0
      %1135 = vmatpush1.bf16.msra.mxu0 0
      %1136 = vmatprep.subr.bf16.mxu0 0
      %1137 = vmatpush1.bf16.msra.mxu0 0
      %1138 = vmatprep.subr.bf16.mxu0 0
      %1139 = vmatpush1.bf16.msra.mxu0 0
      %1140 = vmatprep.mubr.bf16.mxu0 0
      %1141 = vmatmul.mubr.bf16.gmra.mrb[0].mxu0 %v1085
      %v1142 = vpop.f32.mrb[0].mxu0
      %v1143 = vadd.f32 0.0, %v1142
      %v1144 = vpop.f32.mrb[0].mxu0
      %v1145 = vadd.f32 0.0, %v1144
      %v1146 = vpop.f32.mrb[0].mxu0
      %v1147 = vadd.f32 0.0, %v1146
      %v1148 = vpop.f32.mrb[0].mxu0
      %v1149 = vadd.f32 0.0, %v1148
      %1150 = vmatprep.mubr.bf16.mxu0 0
      %1151 = vmatmul.mubr.bf16.gmra.mrb[0].mxu0 %v1088
      %v1152 = vpop.f32.mrb[0].mxu0
      %v1153 = vadd.f32 0.0, %v1152
      %v1154 = vpop.f32.mrb[0].mxu0
      %v1155 = vadd.f32 0.0, %v1154
      %v1156 = vpop.f32.mrb[0].mxu0
      %v1157 = vadd.f32 0.0, %v1156
      %v1158 = vpop.f32.mrb[0].mxu0
      %v1159 = vadd.f32 0.0, %v1158
      %1160 = vmatprep.mubr.bf16.mxu0 0
      %1161 = vmatmul.mubr.bf16.gmra.mrb[0].mxu0 %v1091
      %v1162 = vpop.f32.mrb[0].mxu0
      %v1163 = vadd.f32 0.0, %v1162
      %v1164 = vpop.f32.mrb[0].mxu0
      %v1165 = vadd.f32 0.0, %v1164
      %v1166 = vpop.f32.mrb[0].mxu0
      %v1167 = vadd.f32 0.0, %v1166
      %v1168 = vpop.f32.mrb[0].mxu0
      %v1169 = vadd.f32 0.0, %v1168
      %1170 = vmatprep.mubr.bf16.mxu0 0
      %1171 = vmatmul.mubr.bf16.gmra.mrb[0].mxu0 %v1094
      %v1172 = vpop.f32.mrb[0].mxu0
      %v1173 = vadd.f32 0.0, %v1172
      %v1174 = vpop.f32.mrb[0].mxu0
      %v1175 = vadd.f32 0.0, %v1174
      %v1176 = vpop.f32.mrb[0].mxu0
      %v1177 = vadd.f32 0.0, %v1176
      %v1178 = vpop.f32.mrb[0].mxu0
      %v1179 = vadd.f32 0.0, %v1178
      %1180 = vmatprep.mubr.bf16.mxu0 0
      %1181 = vmatmul.mubr.bf16.gmra.mrb[0].mxu0 %v1097
      %v1182 = vpop.f32.mrb[0].mxu0
      %v1183 = vadd.f32 0.0, %v1182
      %v1184 = vpop.f32.mrb[0].mxu0
      %v1185 = vadd.f32 0.0, %v1184
      %v1186 = vpop.f32.mrb[0].mxu0
      %v1187 = vadd.f32 0.0, %v1186
      %v1188 = vpop.f32.mrb[0].mxu0
      %v1189 = vadd.f32 0.0, %v1188
      %1190 = vmatprep.mubr.bf16.mxu0 0
      %1191 = vmatmul.mubr.bf16.gmra.mrb[0].mxu0 %v1100
      %v1192 = vpop.f32.mrb[0].mxu0
      %v1193 = vadd.f32 0.0, %v1192
      %v1194 = vpop.f32.mrb[0].mxu0
      %v1195 = vadd.f32 0.0, %v1194
      %v1196 = vpop.f32.mrb[0].mxu0
      %v1197 = vadd.f32 0.0, %v1196
      %v1198 = vpop.f32.mrb[0].mxu0
      %v1199 = vadd.f32 0.0, %v1198
      %1200 = vmatprep.mubr.bf16.mxu0 0
      %1201 = vmatmul.mubr.bf16.gmra.mrb[0].mxu0 %v1103
      %v1202 = vpop.f32.mrb[0].mxu0
      %v1203 = vadd.f32 0.0, %v1202
      %v1204 = vpop.f32.mrb[0].mxu0
      %v1205 = vadd.f32 0.0, %v1204
      %v1206 = vpop.f32.mrb[0].mxu0
      %v1207 = vadd.f32 0.0, %v1206
      %v1208 = vpop.f32.mrb[0].mxu0
      %v1209 = vadd.f32 0.0, %v1208
      %1210 = vmatprep.mubr.bf16.mxu0 0
      %1211 = vmatmul.mubr.bf16.gmra.mrb[0].mxu0 %v1106
      %v1212 = vpop.f32.mrb[0].mxu0
      %v1213 = vadd.f32 0.0, %v1212
      %v1214 = vpop.f32.mrb[0].mxu0
      %v1215 = vadd.f32 0.0, %v1214
      %v1216 = vpop.f32.mrb[0].mxu0
      %v1217 = vadd.f32 0.0, %v1216
      %v1218 = vpop.f32.mrb[0].mxu0
      %v1219 = vadd.f32 0.0, %v1218
      %1220 = vdwg.mxu0
      %v1221 = vmax.f32 %v1143, 0.0
      %v1222 = vmax.f32 %v1145, 0.0
      %v1223 = vmax.f32 %v1147, 0.0
      %v1224 = vmax.f32 %v1149, 0.0
      %v1225 = vmax.f32 %v1153, 0.0
      %v1226 = vmax.f32 %v1155, 0.0
      %v1227 = vmax.f32 %v1157, 0.0
      %v1228 = vmax.f32 %v1159, 0.0
      %v1229 = vmax.f32 %v1163, 0.0
      %v1230 = vmax.f32 %v1165, 0.0
      %v1231 = vmax.f32 %v1167, 0.0
      %v1232 = vmax.f32 %v1169, 0.0
      %v1233 = vmax.f32 %v1173, 0.0
      %v1234 = vmax.f32 %v1175, 0.0
      %v1235 = vmax.f32 %v1177, 0.0
      %v1236 = vmax.f32 %v1179, 0.0
      %v1237 = vmax.f32 %v1183, 0.0
      %v1238 = vmax.f32 %v1185, 0.0
      %v1239 = vmax.f32 %v1187, 0.0
      %v1240 = vmax.f32 %v1189, 0.0
      %v1241 = vmax.f32 %v1193, 0.0
      %v1242 = vmax.f32 %v1195, 0.0
      %v1243 = vmax.f32 %v1197, 0.0
      %v1244 = vmax.f32 %v1199, 0.0
      %v1245 = vmax.f32 %v1203, 0.0
      %v1246 = vmax.f32 %v1205, 0.0
      %v1247 = vmax.f32 %v1207, 0.0
      %v1248 = vmax.f32 %v1209, 0.0
      %v1249 = vmax.f32 %v1213, 0.0
      %v1250 = vmax.f32 %v1215, 0.0
      %v1251 = vmax.f32 %v1217, 0.0
      %v1252 = vmax.f32 %v1219, 0.0
      %v1253 = vadd.f32 %v1221, %v1223
      %v1254 = vadd.f32 %v1222, %v1224
      %v1255 = vadd.f32 %v1253, %v1225
      %v1256 = vadd.f32 %v1254, %v1226
      %v1257 = vadd.f32 %v1255, %v1227
      %v1258 = vadd.f32 %v1256, %v1228
      %v1259 = vadd.f32 %v1257, %v1229
      %v1260 = vadd.f32 %v1258, %v1230
      %v1261 = vadd.f32 %v1259, %v1231
      %v1262 = vadd.f32 %v1260, %v1232
      %v1263 = vadd.f32 %v1261, %v1233
      %v1264 = vadd.f32 %v1262, %v1234
      %v1265 = vadd.f32 %v1263, %v1235
      %v1266 = vadd.f32 %v1264, %v1236
      %v1267 = vadd.f32 %v1265, %v1237
      %v1268 = vadd.f32 %v1266, %v1238
      %v1269 = vadd.f32 %v1267, %v1239
      %v1270 = vadd.f32 %v1268, %v1240
      %v1271 = vadd.f32 %v1269, %v1241
      %v1272 = vadd.f32 %v1270, %v1242
      %v1273 = vadd.f32 %v1271, %v1243
      %v1274 = vadd.f32 %v1272, %v1244
      %v1275 = vadd.f32 %v1273, %v1245
      %v1276 = vadd.f32 %v1274, %v1246
      %v1277 = vadd.f32 %v1275, %v1247
      %v1278 = vadd.f32 %v1276, %v1248
      %v1279 = vadd.f32 %v1277, %v1249
      %v1280 = vadd.f32 %v1278, %v1250
      %v1281 = vadd.f32 %v1279, %v1251
      %v1282 = vadd.f32 %v1280, %v1252
      %v1283 = vld [vmem:[#allocation3] sm:$0xff]
      %v1284 = vld [vmem:[#allocation3 + $0x8] sm:$0xff]
      %v1285 = vadd.f32 %v1283, %v1281
      %v1286 = vadd.f32 %v1284, %v1282
      %1287 = vst [vmem:[#allocation3] sm:$0xff] %v1285
      %1288 = vst [vmem:[#allocation3 + $0x8] sm:$0xff] %v1286
      %v1289 = vadd.f32 %v1221, 0.0
      %v1290 = vadd.f32 %v1223, 0.0
      %v1291 = vadd.f32 %v1225, 0.0
      %v1292 = vadd.f32 %v1227, 0.0
      %v1293 = vadd.f32 %v1229, 0.0
      %v1294 = vadd.f32 %v1231, 0.0
      %v1295 = vadd.f32 %v1233, 0.0
      %v1296 = vadd.f32 %v1235, 0.0
      %v1297 = vadd.f32 %v1237, 0.0
      %v1298 = vadd.f32 %v1239, 0.0
      %v1299 = vadd.f32 %v1241, 0.0
      %v1300 = vadd.f32 %v1243, 0.0
      %v1301 = vadd.f32 %v1245, 0.0
      %v1302 = vadd.f32 %v1247, 0.0
      %v1303 = vadd.f32 %v1249, 0.0
      %v1304 = vadd.f32 %v1251, 0.0
      %v1305 = vadd.f32 %v1289, %v1222
      %v1306 = vadd.f32 %v1290, %v1224
      %v1307 = vadd.f32 %v1291, %v1226
      %v1308 = vadd.f32 %v1292, %v1228
      %v1309 = vadd.f32 %v1293, %v1230
      %v1310 = vadd.f32 %v1294, %v1232
      %v1311 = vadd.f32 %v1295, %v1234
      %v1312 = vadd.f32 %v1296, %v1236
      %v1313 = vadd.f32 %v1297, %v1238
      %v1314 = vadd.f32 %v1298, %v1240
      %v1315 = vadd.f32 %v1299, %v1242
      %v1316 = vadd.f32 %v1300, %v1244
      %v1317 = vadd.f32 %v1301, %v1246
      %v1318 = vadd.f32 %v1302, %v1248
      %v1319 = vadd.f32 %v1303, %v1250
      %v1320 = vadd.f32 %v1304, %v1252
      %1321 = vmatprep.subr.mxu0 0.0
      %1322 = vmatpush1.xpose.msra.mxu0 %v1305
      %1323 = vmatprep.subr.mxu0 0.0
      %1324 = vmatpush1.xpose.msra.mxu0 %v1306
      %1325 = vmatprep.subr.mxu0 0.0
      %1326 = vmatpush1.xpose.msra.mxu0 %v1307
      %1327 = vmatprep.subr.mxu0 0.0
      %1328 = vmatpush1.xpose.msra.mxu0 %v1308
      %1329 = vmatprep.subr.mxu0 0.0
      %1330 = vmatpush1.xpose.msra.mxu0 %v1309
      %1331 = vmatprep.subr.mxu0 0.0
      %1332 = vmatpush1.xpose.msra.mxu0 %v1310
      %1333 = vmatprep.subr.mxu0 0.0
      %1334 = vmatpush1.xpose.msra.mxu0 %v1311
      %1335 = vmatprep.subr.mxu0 0.0
      %1336 = vmatpush1.xpose.msra.mxu0 %v1312
      %1337 = vmatprep.subr.mxu0 0.0
      %1338 = vmatpush1.xpose.msra.mxu0 %v1313
      %1339 = vmatprep.subr.mxu0 0.0
      %1340 = vmatpush1.xpose.msra.mxu0 %v1314
      %1341 = vmatprep.subr.mxu0 0.0
      %1342 = vmatpush1.xpose.msra.mxu0 %v1315
      %1343 = vmatprep.subr.mxu0 0.0
      %1344 = vmatpush1.xpose.msra.mxu0 %v1316
      %1345 = vmatprep.subr.mxu0 0.0
      %1346 = vmatpush1.xpose.msra.mxu0 %v1317
      %1347 = vmatprep.subr.mxu0 0.0
      %1348 = vmatpush1.xpose.msra.mxu0 %v1318
      %1349 = vmatprep.subr.mxu0 0.0
      %1350 = vmatpush1.xpose.msra.mxu0 %v1319
      %1351 = vmatprep.subr.mxu0 0.0
      %1352 = vmatpush1.xpose.msra.mxu0 %v1320
      %1353 = vmatprep.subr.mxu0 0.0
      %1354 = vmatpush1.xpose.msra.mxu0 0.0
      %1355 = vmatprep.subr.mxu0 0.0
      %1356 = vmatpush1.xpose.msra.mxu0 0.0
      %1357 = vmatprep.subr.mxu0 0.0
      %1358 = vmatpush1.xpose.msra.mxu0 0.0
      %1359 = vmatprep.subr.mxu0 0.0
      %1360 = vmatpush1.xpose.msra.mxu0 0.0
      %1361 = vmatprep.subr.mxu0 0.0
      %1362 = vmatpush1.xpose.msra.mxu0 0.0
      %1363 = vmatprep.subr.mxu0 0.0
      %1364 = vmatpush1.xpose.msra.mxu0 0.0
      %1365 = vmatprep.subr.mxu0 0.0
      %1366 = vmatpush1.xpose.msra.mxu0 0.0
      %1367 = vmatprep.subr.mxu0 0.0
      %1368 = vmatpush1.xpose.msra.mxu0 0.0
      %1369 = vmatprep.subr.mxu0 0.0
      %1370 = vmatpush1.xpose.msra.mxu0 0.0
      %1371 = vmatprep.subr.mxu0 0.0
      %1372 = vmatpush1.xpose.msra.mxu0 0.0
      %1373 = vmatprep.subr.mxu0 0.0
      %1374 = vmatpush1.xpose.msra.mxu0 0.0
      %1375 = vmatprep.subr.mxu0 0.0
      %1376 = vmatpush1.xpose.msra.mxu0 0.0
      %1377 = vmatprep.subr.mxu0 0.0
      %1378 = vmatpush1.xpose.msra.mxu0 0.0
      %1379 = vmatprep.subr.mxu0 0.0
      %1380 = vmatpush1.xpose.msra.mxu0 0.0
      %1381 = vmatprep.subr.mxu0 0.0
      %1382 = vmatpush1.xpose.msra.mxu0 0.0
      %1383 = vmatprep.subr.mxu0 0.0
      %1384 = vmatpush1.xpose.msra.mxu0 0.0
      %1385 = vmatprep.mubr.f32.mxu0 0.0
      %1386 = vmatmul.mubr.f32.gmra.mrb[0].mxu0 1.0
      %v1387 = vpop.f32.mrb[0].mxu0
      %v1388 = vadd.f32 0.0, %v1387
      %v1389 = vpop.f32.mrb[0].mxu0
      %1390 = vdwg.mxu0
      %v1391 = vld [vmem:[%s3 + $0x40] sm:$0xf]
      %v1392 = vld [vmem:[%s3 + $0x44] sm:$0xf]
      %v1393 = vld [vmem:[%s3 + $0x48] sm:$0xf]
      %v1394 = vld [vmem:[%s3 + $0x4c] sm:$0xf]
      %v1395 = vld [vmem:[%s3 + $0x50] sm:$0xf]
      %v1396 = vld [vmem:[%s3 + $0x54] sm:$0xf]
      %v1397 = vld [vmem:[%s3 + $0x58] sm:$0xf]
      %v1398 = vld [vmem:[%s3 + $0x5c] sm:$0xf]
      %v1399 = vld [vmem:[%s2 + $0x80] sm:$0xff]
      %v1400 = vld [vmem:[%s2 + $0x88] sm:$0xff]
      %v1401 = vld [vmem:[%s2 + $0x90] sm:$0xff]
      %v1402 = vld [vmem:[%s2 + $0x98] sm:$0xff]
      %v1403 = vld [vmem:[%s2 + $0xa0] sm:$0xff]
      %v1404 = vld [vmem:[%s2 + $0xa8] sm:$0xff]
      %v1405 = vld [vmem:[%s2 + $0xb0] sm:$0xff]
      %v1406 = vld [vmem:[%s2 + $0xb8] sm:$0xff]
      %v1407 = vld [vmem:[%s2 + $0xc0] sm:$0xff]
      %v1408 = vld [vmem:[%s2 + $0xc8] sm:$0xff]
      %v1409 = vld [vmem:[%s2 + $0xd0] sm:$0xff]
      %v1410 = vld [vmem:[%s2 + $0xd8] sm:$0xff]
      %v1411 = vld [vmem:[%s2 + $0xe0] sm:$0xff]
      %v1412 = vld [vmem:[%s2 + $0xe8] sm:$0xff]
      %v1413 = vld [vmem:[%s2 + $0xf0] sm:$0xff]
      %v1414 = vld [vmem:[%s2 + $0xf8] sm:$0xff]
      %1416 = vset.pattern.permute.xlu0 0
      %1417 = vperm.xlu0 %1416, %v1399
      %v1418 = vpop.permute.xlu0 %1417
      %1421 = vset.pattern.permute.xlu0 0
      %1422 = vperm.xlu0 %1421, %v1400
      %v1423 = vpop.permute.xlu0 %1422
      %1426 = vset.pattern.permute.xlu0 0
      %1427 = vperm.xlu0 %1426, %v1401
      %v1428 = vpop.permute.xlu0 %1427
      %1431 = vset.pattern.permute.xlu0 0
      %1432 = vperm.xlu0 %1431, %v1402
      %v1433 = vpop.permute.xlu0 %1432
      %1436 = vset.pattern.permute.xlu0 0
      %1437 = vperm.xlu0 %1436, %v1403
      %v1438 = vpop.permute.xlu0 %1437
      %1441 = vset.pattern.permute.xlu0 0
      %1442 = vperm.xlu0 %1441, %v1404
      %v1443 = vpop.permute.xlu0 %1442
      %1446 = vset.pattern.permute.xlu0 0
      %1447 = vperm.xlu0 %1446, %v1405
      %v1448 = vpop.permute.xlu0 %1447
      %1451 = vset.pattern.permute.xlu0 0
      %1452 = vperm.xlu0 %1451, %v1406
      %v1453 = vpop.permute.xlu0 %1452
      %v1455 = vlaneseq
      %v1456 = vshrl.u32 %v1455, 7
      %v1457 = vsub.s32 0, %v1456
      %v1458 = vrot.slane %v1388, %v1457
      %v1459 = vmul.f32 %v1418, %v1458
      %v1460 = vmul.f32 %v1423, %v1458
      %v1461 = vmul.f32 %v1428, %v1458
      %v1462 = vmul.f32 %v1433, %v1458
      %v1463 = vmul.f32 %v1438, %v1458
      %v1464 = vmul.f32 %v1443, %v1458
      %v1465 = vmul.f32 %v1448, %v1458
      %v1466 = vmul.f32 %v1453, %v1458
      %v1475 = vunpack.c.l.b16 %v1391
      %v1476 = vunpack.c.l.b16 %v1392
      %v1477 = vunpack.c.l.b16 %v1393
      %v1478 = vunpack.c.l.b16 %v1394
      %v1479 = vunpack.c.l.b16 %v1395
      %v1480 = vunpack.c.l.b16 %v1396
      %v1481 = vunpack.c.l.b16 %v1397
      %v1482 = vunpack.c.l.b16 %v1398
      %v1483 = vpack.c.b16 %v1476, %v1475
      %v1484 = vpack.c.b16 %v1478, %v1477
      %v1485 = vpack.c.b16 %v1480, %v1479
      %v1486 = vpack.c.b16 %v1482, %v1481
      %v1488 = vsel %vm1083, %v1483, 0
      %v1491 = vsel %vm1083, %v1484, 0
      %v1494 = vsel %vm1083, %v1485, 0
      %v1497 = vsel %vm1083, %v1486, 0
      %1499 = vmatprep.subr.bf16.mxu0 0
      %1500 = vmatpush1.bf16.msra.mxu0 %v1059
      %1501 = vmatprep.subr.bf16.mxu0 0
      %1502 = vmatpush1.bf16.msra.mxu0 %v1060
      %1503 = vmatprep.subr.bf16.mxu0 0
      %1504 = vmatpush1.bf16.msra.mxu0 0
      %1505 = vmatprep.subr.bf16.mxu0 0
      %1506 = vmatpush1.bf16.msra.mxu0 0
      %1507 = vmatprep.subr.bf16.mxu0 0
      %1508 = vmatpush1.bf16.msra.mxu0 0
      %1509 = vmatprep.subr.bf16.mxu0 0
      %1510 = vmatpush1.bf16.msra.mxu0 0
      %1511 = vmatprep.subr.bf16.mxu0 0
      %1512 = vmatpush1.bf16.msra.mxu0 0
      %1513 = vmatprep.subr.bf16.mxu0 0
      %1514 = vmatpush1.bf16.msra.mxu0 0
      %1515 = vmatprep.subr.bf16.mxu0 0
      %1516 = vmatpush1.bf16.msra.mxu0 0
      %1517 = vmatprep.subr.bf16.mxu0 0
      %1518 = vmatpush1.bf16.msra.mxu0 0
      %1519 = vmatprep.subr.bf16.mxu0 0
      %1520 = vmatpush1.bf16.msra.mxu0 0
      %1521 = vmatprep.subr.bf16.mxu0 0
      %1522 = vmatpush1.bf16.msra.mxu0 0
      %1523 = vmatprep.subr.bf16.mxu0 0
      %1524 = vmatpush1.bf16.msra.mxu0 0
      %1525 = vmatprep.subr.bf16.mxu0 0
      %1526 = vmatpush1.bf16.msra.mxu0 0
      %1527 = vmatprep.subr.bf16.mxu0 0
      %1528 = vmatpush1.bf16.msra.mxu0 0
      %1529 = vmatprep.subr.bf16.mxu0 0
      %1530 = vmatpush1.bf16.msra.mxu0 0
      %1531 = vmatprep.mubr.bf16.mxu0 0
      %1532 = vmatmul.mubr.bf16.gmra.mrb[0].mxu0 %v1488
      %v1533 = vpop.f32.mrb[0].mxu0
      %v1534 = vadd.f32 %v1459, %v1533
      %v1535 = vpop.f32.mrb[0].mxu0
      %v1536 = vpop.f32.mrb[0].mxu0
      %v1537 = vadd.f32 %v1460, %v1536
      %v1538 = vpop.f32.mrb[0].mxu0
      %1539 = vmatprep.mubr.bf16.mxu0 0
      %1540 = vmatmul.mubr.bf16.gmra.mrb[0].mxu0 %v1491
      %v1541 = vpop.f32.mrb[0].mxu0
      %v1542 = vadd.f32 %v1461, %v1541
      %v1543 = vpop.f32.mrb[0].mxu0
      %v1544 = vpop.f32.mrb[0].mxu0
      %v1545 = vadd.f32 %v1462, %v1544
      %v1546 = vpop.f32.mrb[0].mxu0
      %1547 = vmatprep.mubr.bf16.mxu0 0
      %1548 = vmatmul.mubr.bf16.gmra.mrb[0].mxu0 %v1494
      %v1549 = vpop.f32.mrb[0].mxu0
      %v1550 = vadd.f32 %v1463, %v1549
      %v1551 = vpop.f32.mrb[0].mxu0
      %v1552 = vpop.f32.mrb[0].mxu0
      %v1553 = vadd.f32 %v1464, %v1552
      %v1554 = vpop.f32.mrb[0].mxu0
      %1555 = vmatprep.mubr.bf16.mxu0 0
      %1556 = vmatmul.mubr.bf16.gmra.mrb[0].mxu0 %v1497
      %v1557 = vpop.f32.mrb[0].mxu0
      %v1558 = vadd.f32 %v1465, %v1557
      %v1559 = vpop.f32.mrb[0].mxu0
      %v1560 = vpop.f32.mrb[0].mxu0
      %v1561 = vadd.f32 %v1466, %v1560
      %v1562 = vpop.f32.mrb[0].mxu0
      %1563 = vdwg.mxu0
      %1565 = vset.pattern.permute.xlu0 0
      %1566 = vperm.xlu0 %1565, %v1407
      %v1567 = vpop.permute.xlu0 %1566
      %1570 = vset.pattern.permute.xlu0 0
      %1571 = vperm.xlu0 %1570, %v1408
      %v1572 = vpop.permute.xlu0 %1571
      %1575 = vset.pattern.permute.xlu0 0
      %1576 = vperm.xlu0 %1575, %v1409
      %v1577 = vpop.permute.xlu0 %1576
      %1580 = vset.pattern.permute.xlu0 0
      %1581 = vperm.xlu0 %1580, %v1410
      %v1582 = vpop.permute.xlu0 %1581
      %1585 = vset.pattern.permute.xlu0 0
      %1586 = vperm.xlu0 %1585, %v1411
      %v1587 = vpop.permute.xlu0 %1586
      %1590 = vset.pattern.permute.xlu0 0
      %1591 = vperm.xlu0 %1590, %v1412
      %v1592 = vpop.permute.xlu0 %1591
      %1595 = vset.pattern.permute.xlu0 0
      %1596 = vperm.xlu0 %1595, %v1413
      %v1597 = vpop.permute.xlu0 %1596
      %1600 = vset.pattern.permute.xlu0 0
      %1601 = vperm.xlu0 %1600, %v1414
      %v1602 = vpop.permute.xlu0 %1601
      %v1604 = vadd.f32 %v1534, %v1567
      %v1605 = vadd.f32 %v1537, %v1572
      %v1606 = vadd.f32 %v1542, %v1577
      %v1607 = vadd.f32 %v1545, %v1582
      %v1608 = vadd.f32 %v1550, %v1587
      %v1609 = vadd.f32 %v1553, %v1592
      %v1610 = vadd.f32 %v1558, %v1597
      %v1611 = vadd.f32 %v1561, %v1602
      %v1612 = vmax.f32 %v1604, 0.0
      %v1613 = vmax.f32 %v1605, 0.0
      %v1614 = vmax.f32 %v1606, 0.0
      %v1615 = vmax.f32 %v1607, 0.0
      %v1616 = vmax.f32 %v1608, 0.0
      %v1617 = vmax.f32 %v1609, 0.0
      %v1618 = vmax.f32 %v1610, 0.0
      %v1619 = vmax.f32 %v1611, 0.0
      %v1620 = vld [vmem:[%s3 + $0x60] sm:$0xf]
      %v1621 = vld [vmem:[%s3 + $0x68] sm:$0xf]
      %v1622 = vld [vmem:[%s2 + $0x100] sm:$0xff]
      %v1623 = vld [vmem:[%s2 + $0x108] sm:$0xff]
      %v1624 = vpack.c.bf16 %v1613, %v1612
      %v1625 = vpack.c.bf16 %v1615, %v1614
      %v1626 = vpack.c.bf16 %v1617, %v1616
      %v1627 = vpack.c.bf16 %v1619, %v1618
      %v1629 = vsel %vm1083, %v1621, 0
      %1631 = vmatprep.subr.bf16.mxu0 0
      %1632 = vmatpush1.bf16.msra.mxu0 %v1059
      %1633 = vmatprep.subr.bf16.mxu0 0
      %1634 = vmatpush1.bf16.msra.mxu0 %v1060
      %1635 = vmatprep.subr.bf16.mxu0 0
      %1636 = vmatpush1.bf16.msra.mxu0 0
      %1637 = vmatprep.subr.bf16.mxu0 0
      %1638 = vmatpush1.bf16.msra.mxu0 0
      %1639 = vmatprep.subr.bf16.mxu0 0
      %1640 = vmatpush1.bf16.msra.mxu0 0
      %1641 = vmatprep.subr.bf16.mxu0 0
      %1642 = vmatpush1.bf16.msra.mxu0 0
      %1643 = vmatprep.subr.bf16.mxu0 0
      %1644 = vmatpush1.bf16.msra.mxu0 0
      %1645 = vmatprep.subr.bf16.mxu0 0
      %1646 = vmatpush1.bf16.msra.mxu0 0
      %1647 = vmatprep.subr.bf16.mxu0 0
      %1648 = vmatpush1.bf16.msra.mxu0 0
      %1649 = vmatprep.subr.bf16.mxu0 0
      %1650 = vmatpush1.bf16.msra.mxu0 0
      %1651 = vmatprep.subr.bf16.mxu0 0
      %1652 = vmatpush1.bf16.msra.mxu0 0
      %1653 = vmatprep.subr.bf16.mxu0 0
      %1654 = vmatpush1.bf16.msra.mxu0 0
      %1655 = vmatprep.subr.bf16.mxu0 0
      %1656 = vmatpush1.bf16.msra.mxu0 0
      %1657 = vmatprep.subr.bf16.mxu0 0
      %1658 = vmatpush1.bf16.msra.mxu0 0
      %1659 = vmatprep.subr.bf16.mxu0 0
      %1660 = vmatpush1.bf16.msra.mxu0 0
      %1661 = vmatprep.subr.bf16.mxu0 0
      %1662 = vmatpush1.bf16.msra.mxu0 0
      %1663 = vmatprep.mubr.bf16.mxu0 0
      %1664 = vmatmul.mubr.bf16.gmra.mrb[0].mxu0 %v1629
      %v1665 = vpop.f32.mrb[0].mxu0
      %v1666 = vadd.f32 0.0, %v1665
      %v1667 = vpop.f32.mrb[0].mxu0
      %v1668 = vpop.f32.mrb[0].mxu0
      %v1669 = vpop.f32.mrb[0].mxu0
      %1670 = vdwg.mxu0
      %v1672 = vsel %vm981, %v1620, 0
      %1674 = vmatprep.subr.bf16.mxu0 0
      %1675 = vmatpush1.bf16.msra.mxu0 %v1624
      %1676 = vmatprep.subr.bf16.mxu0 0
      %1677 = vmatpush1.bf16.msra.mxu0 %v1625
      %1678 = vmatprep.subr.bf16.mxu0 0
      %1679 = vmatpush1.bf16.msra.mxu0 %v1626
      %1680 = vmatprep.subr.bf16.mxu0 0
      %1681 = vmatpush1.bf16.msra.mxu0 %v1627
      %1682 = vmatprep.subr.bf16.mxu0 0
      %1683 = vmatpush1.bf16.msra.mxu0 0
      %1684 = vmatprep.subr.bf16.mxu0 0
      %1685 = vmatpush1.bf16.msra.mxu0 0
      %1686 = vmatprep.subr.bf16.mxu0 0
      %1687 = vmatpush1.bf16.msra.mxu0 0
      %1688 = vmatprep.subr.bf16.mxu0 0
      %1689 = vmatpush1.bf16.msra.mxu0 0
      %1690 = vmatprep.subr.bf16.mxu0 0
      %1691 = vmatpush1.bf16.msra.mxu0 0
      %1692 = vmatprep.subr.bf16.mxu0 0
      %1693 = vmatpush1.bf16.msra.mxu0 0
      %1694 = vmatprep.subr.bf16.mxu0 0
      %1695 = vmatpush1.bf16.msra.mxu0 0
      %1696 = vmatprep.subr.bf16.mxu0 0
      %1697 = vmatpush1.bf16.msra.mxu0 0
      %1698 = vmatprep.subr.bf16.mxu0 0
      %1699 = vmatpush1.bf16.msra.mxu0 0
      %1700 = vmatprep.subr.bf16.mxu0 0
      %1701 = vmatpush1.bf16.msra.mxu0 0
      %1702 = vmatprep.subr.bf16.mxu0 0
      %1703 = vmatpush1.bf16.msra.mxu0 0
      %1704 = vmatprep.subr.bf16.mxu0 0
      %1705 = vmatpush1.bf16.msra.mxu0 0
      %1706 = vmatprep.mubr.bf16.mxu0 0
      %1707 = vmatmul.mubr.bf16.gmra.mrb[0].mxu0 %v1672
      %v1708 = vpop.f32.mrb[0].mxu0
      %v1709 = vadd.f32 %v1666, %v1708
      %v1710 = vpop.f32.mrb[0].mxu0
      %v1711 = vpop.f32.mrb[0].mxu0
      %v1712 = vpop.f32.mrb[0].mxu0
      %1713 = vdwg.mxu0
      %1715 = vset.pattern.permute.xlu0 0
      %1716 = vperm.xlu0 %1715, %v1622
      %v1717 = vpop.permute.xlu0 %1716
      %v1719 = vmul.f32 %v1717, %v1458
      %v1720 = vadd.f32 %v1709, %v1719
      %1722 = vset.pattern.permute.xlu0 0
      %1723 = vperm.xlu0 %1722, %v1623
      %v1724 = vpop.permute.xlu0 %1723
      %v1726 = vadd.f32 %v1720, %v1724
      %v1727 = vlaneseq
      %v1728 = vshrl.u32 %v1727, 7
      %vm1729 = vcmp.lt.s32.totalorder %v1728, 2
      %v1730 = vsel %vm1729, 1, 0
      %vm1731 = vcmp.eq.s32.totalorder %v1730, 1
      %v1732 = vsel %vm1731, %v1726, -inf
      %v1733 = vrot.slane %v1732, 4
      %v1734 = vmax.f32 %v1732, %v1733
      %v1735 = vrot.slane %v1734, 2
      %v1736 = vmax.f32 %v1734, %v1735
      %v1737 = vrot.slane %v1736, 1
      %v1738 = vmax.f32 %v1736, %v1737
      %v1739 = vsub.f32 %v1726, %v1738
      %v1740 = vmul.f32 %v1739, 1.442695
      %v1741 = vpow.pop %v1740
      %v1742 = vsel %vm1731, %v1741, 0.0
      %v1743 = vrot.slane %v1742, 4
      %v1744 = vadd.f32 %v1742, %v1743
      %v1745 = vrot.slane %v1744, 2
      %v1746 = vadd.f32 %v1744, %v1745
      %v1747 = vrot.slane %v1746, 1
      %v1748 = vadd.f32 %v1746, %v1747
      %v1749 = vlog2.pop %v1748
      %v1750 = vmul.f32 %v1749, 0.6931472
      %v1751 = vsub.f32 %v1739, %v1750
      %1752 = vst [vmem:[%s337] sm:$0xff] %v1751
      %p1753 = scmp.eq.s32.totalorder %s24, 1
      // Predicated region
      $region49: #{seg_net_forward.1} parent=43 // pred_check
        %p1754 = pneg %p1753
      $region50: #{seg_net_forward.1} parent=43 // pred_check_branch
        %1756 = sbr.rel (%p1754) target = $region52
      $region51: #{seg_net_forward.1} parent=43 // pred_region
        %v1757 = vld [vmem:[#allocation2] sm:$0xff]
        %v1758 = vld [vmem:[#allocation2 + $0x8] sm:$0xff]
        %v1759 = vld [vmem:[#allocation2 + $0x10] sm:$0xff]
        %v1760 = vld [vmem:[#allocation2 + $0x18] sm:$0xff]
        %v1761 = vld [vmem:[#allocation3] sm:$0xff]
        %v1762 = vld [vmem:[#allocation3 + $0x8] sm:$0xff]
        %v1763 = vrot.slane %v1761, 4
        %v1764 = vadd.f32 %v1761, %v1763
        %v1765 = vrot.slane %v1764, 2
        %v1766 = vadd.f32 %v1764, %v1765
        %v1767 = vrot.slane %v1766, 1
        %v1768 = vadd.f32 %v1766, %v1767
        %v1769 = vrot.slane %v1762, 4
        %v1770 = vadd.f32 %v1762, %v1769
        %v1771 = vrot.slane %v1770, 2
        %v1772 = vadd.f32 %v1770, %v1771
        %v1773 = vrot.slane %v1772, 1
        %v1774 = vadd.f32 %v1772, %v1773
        %v1775 = vld [vmem:[%s5 + $0x40] sm:$0xf]
        %v1776 = vld [vmem:[%s5 + $0x44] sm:$0xf]
        %v1777 = vld [vmem:[%s5 + $0x48] sm:$0xf]
        %v1778 = vld [vmem:[%s5 + $0x4c] sm:$0xf]
        %v1779 = vld [vmem:[%s5 + $0x50] sm:$0xf]
        %v1780 = vld [vmem:[%s5 + $0x54] sm:$0xf]
        %v1781 = vld [vmem:[%s5 + $0x58] sm:$0xf]
        %v1782 = vld [vmem:[%s5 + $0x5c] sm:$0xf]
        %v1783 = vld [vmem:[%s4 + $0x80] sm:$0xff]
        %v1784 = vld [vmem:[%s4 + $0x88] sm:$0xff]
        %v1785 = vld [vmem:[%s4 + $0x90] sm:$0xff]
        %v1786 = vld [vmem:[%s4 + $0x98] sm:$0xff]
        %v1787 = vld [vmem:[%s4 + $0xa0] sm:$0xff]
        %v1788 = vld [vmem:[%s4 + $0xa8] sm:$0xff]
        %v1789 = vld [vmem:[%s4 + $0xb0] sm:$0xff]
        %v1790 = vld [vmem:[%s4 + $0xb8] sm:$0xff]
        %v1791 = vld [vmem:[%s4 + $0xc0] sm:$0xff]
        %v1792 = vld [vmem:[%s4 + $0xc8] sm:$0xff]
        %v1793 = vld [vmem:[%s4 + $0xd0] sm:$0xff]
        %v1794 = vld [vmem:[%s4 + $0xd8] sm:$0xff]
        %v1795 = vld [vmem:[%s4 + $0xe0] sm:$0xff]
        %v1796 = vld [vmem:[%s4 + $0xe8] sm:$0xff]
        %v1797 = vld [vmem:[%s4 + $0xf0] sm:$0xff]
        %v1798 = vld [vmem:[%s4 + $0xf8] sm:$0xff]
        %1800 = vset.pattern.permute.xlu0 0
        %1801 = vperm.xlu0 %1800, %v1783
        %v1802 = vpop.permute.xlu0 %1801
        %1805 = vset.pattern.permute.xlu0 0
        %1806 = vperm.xlu0 %1805, %v1784
        %v1807 = vpop.permute.xlu0 %1806
        %1810 = vset.pattern.permute.xlu0 0
        %1811 = vperm.xlu0 %1810, %v1785
        %v1812 = vpop.permute.xlu0 %1811
        %1815 = vset.pattern.permute.xlu0 0
        %1816 = vperm.xlu0 %1815, %v1786
        %v1817 = vpop.permute.xlu0 %1816
        %1820 = vset.pattern.permute.xlu0 0
        %1821 = vperm.xlu0 %1820, %v1787
        %v1822 = vpop.permute.xlu0 %1821
        %1825 = vset.pattern.permute.xlu0 0
        %1826 = vperm.xlu0 %1825, %v1788
        %v1827 = vpop.permute.xlu0 %1826
        %1830 = vset.pattern.permute.xlu0 0
        %1831 = vperm.xlu0 %1830, %v1789
        %v1832 = vpop.permute.xlu0 %1831
        %1835 = vset.pattern.permute.xlu0 0
        %1836 = vperm.xlu0 %1835, %v1790
        %v1837 = vpop.permute.xlu0 %1836
        %v1839 = vmul.f32 %v1802, %v1768
        %v1840 = vmul.f32 %v1802, %v1774
        %v1841 = vmul.f32 %v1807, %v1768
        %v1842 = vmul.f32 %v1807, %v1774
        %v1843 = vmul.f32 %v1812, %v1768
        %v1844 = vmul.f32 %v1812, %v1774
        %v1845 = vmul.f32 %v1817, %v1768
        %v1846 = vmul.f32 %v1817, %v1774
        %v1847 = vmul.f32 %v1822, %v1768
        %v1848 = vmul.f32 %v1822, %v1774
        %v1849 = vmul.f32 %v1827, %v1768
        %v1850 = vmul.f32 %v1827, %v1774
        %v1851 = vmul.f32 %v1832, %v1768
        %v1852 = vmul.f32 %v1832, %v1774
        %v1853 = vmul.f32 %v1837, %v1768
        %v1854 = vmul.f32 %v1837, %v1774
        %v1863 = vunpack.c.l.b16 %v1775
        %v1864 = vunpack.c.l.b16 %v1776
        %v1865 = vunpack.c.l.b16 %v1777
        %v1866 = vunpack.c.l.b16 %v1778
        %v1867 = vunpack.c.l.b16 %v1779
        %v1868 = vunpack.c.l.b16 %v1780
        %v1869 = vunpack.c.l.b16 %v1781
        %v1870 = vunpack.c.l.b16 %v1782
        %v1871 = vpack.c.b16 %v1864, %v1863
        %v1872 = vpack.c.b16 %v1866, %v1865
        %v1873 = vpack.c.b16 %v1868, %v1867
        %v1874 = vpack.c.b16 %v1870, %v1869
        %v1876 = vsel %vm1083, %v1871, 0
        %v1879 = vsel %vm1083, %v1872, 0
        %v1882 = vsel %vm1083, %v1873, 0
        %v1885 = vsel %vm1083, %v1874, 0
        %1887 = vmatprep.subr.bf16.mxu0 %v1758
        %1888 = vmatpush1.bf16.msra.mxu0 %v1757
        %1889 = vmatprep.subr.bf16.mxu0 %v1760
        %1890 = vmatpush1.bf16.msra.mxu0 %v1759
        %1891 = vmatprep.subr.bf16.mxu0 0
        %1892 = vmatpush1.bf16.msra.mxu0 0
        %1893 = vmatprep.subr.bf16.mxu0 0
        %1894 = vmatpush1.bf16.msra.mxu0 0
        %1895 = vmatprep.subr.bf16.mxu0 0
        %1896 = vmatpush1.bf16.msra.mxu0 0
        %1897 = vmatprep.subr.bf16.mxu0 0
        %1898 = vmatpush1.bf16.msra.mxu0 0
        %1899 = vmatprep.subr.bf16.mxu0 0
        %1900 = vmatpush1.bf16.msra.mxu0 0
        %1901 = vmatprep.subr.bf16.mxu0 0
        %1902 = vmatpush1.bf16.msra.mxu0 0
        %1903 = vmatprep.subr.bf16.mxu0 0
        %1904 = vmatpush1.bf16.msra.mxu0 0
        %1905 = vmatprep.subr.bf16.mxu0 0
        %1906 = vmatpush1.bf16.msra.mxu0 0
        %1907 = vmatprep.subr.bf16.mxu0 0
        %1908 = vmatpush1.bf16.msra.mxu0 0
        %1909 = vmatprep.subr.bf16.mxu0 0
        %1910 = vmatpush1.bf16.msra.mxu0 0
        %1911 = vmatprep.subr.bf16.mxu0 0
        %1912 = vmatpush1.bf16.msra.mxu0 0
        %1913 = vmatprep.subr.bf16.mxu0 0
        %1914 = vmatpush1.bf16.msra.mxu0 0
        %1915 = vmatprep.subr.bf16.mxu0 0
        %1916 = vmatpush1.bf16.msra.mxu0 0
        %1917 = vmatprep.subr.bf16.mxu0 0
        %1918 = vmatpush1.bf16.msra.mxu0 0
        %1919 = vmatprep.mubr.bf16.mxu0 0
        %1920 = vmatmul.mubr.bf16.gmra.mrb[0].mxu0 %v1876
        %v1921 = vpop.f32.mrb[0].mxu0
        %v1922 = vadd.f32 %v1839, %v1921
        %v1923 = vpop.f32.mrb[0].mxu0
        %v1924 = vadd.f32 %v1840, %v1923
        %v1925 = vpop.f32.mrb[0].mxu0
        %v1926 = vadd.f32 %v1841, %v1925
        %v1927 = vpop.f32.mrb[0].mxu0
        %v1928 = vadd.f32 %v1842, %v1927
        %1929 = vmatprep.mubr.bf16.mxu0 0
        %1930 = vmatmul.mubr.bf16.gmra.mrb[0].mxu0 %v1879
        %v1931 = vpop.f32.mrb[0].mxu0
        %v1932 = vadd.f32 %v1843, %v1931
        %v1933 = vpop.f32.mrb[0].mxu0
        %v1934 = vadd.f32 %v1844, %v1933
        %v1935 = vpop.f32.mrb[0].mxu0
        %v1936 = vadd.f32 %v1845, %v1935
        %v1937 = vpop.f32.mrb[0].mxu0
        %v1938 = vadd.f32 %v1846, %v1937
        %1939 = vmatprep.mubr.bf16.mxu0 0
        %1940 = vmatmul.mubr.bf16.gmra.mrb[0].mxu0 %v1882
        %v1941 = vpop.f32.mrb[0].mxu0
        %v1942 = vadd.f32 %v1847, %v1941
        %v1943 = vpop.f32.mrb[0].mxu0
        %v1944 = vadd.f32 %v1848, %v1943
        %v1945 = vpop.f32.mrb[0].mxu0
        %v1946 = vadd.f32 %v1849, %v1945
        %v1947 = vpop.f32.mrb[0].mxu0
        %v1948 = vadd.f32 %v1850, %v1947
        %1949 = vmatprep.mubr.bf16.mxu0 0
        %1950 = vmatmul.mubr.bf16.gmra.mrb[0].mxu0 %v1885
        %v1951 = vpop.f32.mrb[0].mxu0
        %v1952 = vadd.f32 %v1851, %v1951
        %v1953 = vpop.f32.mrb[0].mxu0
        %v1954 = vadd.f32 %v1852, %v1953
        %v1955 = vpop.f32.mrb[0].mxu0
        %v1956 = vadd.f32 %v1853, %v1955
        %v1957 = vpop.f32.mrb[0].mxu0
        %v1958 = vadd.f32 %v1854, %v1957
        %1959 = vdwg.mxu0
        %1961 = vset.pattern.permute.xlu0 0
        %1962 = vperm.xlu0 %1961, %v1791
        %v1963 = vpop.permute.xlu0 %1962
        %1966 = vset.pattern.permute.xlu0 0
        %1967 = vperm.xlu0 %1966, %v1792
        %v1968 = vpop.permute.xlu0 %1967
        %1971 = vset.pattern.permute.xlu0 0
        %1972 = vperm.xlu0 %1971, %v1793
        %v1973 = vpop.permute.xlu0 %1972
        %1976 = vset.pattern.permute.xlu0 0
        %1977 = vperm.xlu0 %1976, %v1794
        %v1978 = vpop.permute.xlu0 %1977
        %1981 = vset.pattern.permute.xlu0 0
        %1982 = vperm.xlu0 %1981, %v1795
        %v1983 = vpop.permute.xlu0 %1982
        %1986 = vset.pattern.permute.xlu0 0
        %1987 = vperm.xlu0 %1986, %v1796
        %v1988 = vpop.permute.xlu0 %1987
        %1991 = vset.pattern.permute.xlu0 0
        %1992 = vperm.xlu0 %1991, %v1797
        %v1993 = vpop.permute.xlu0 %1992
        %1996 = vset.pattern.permute.xlu0 0
        %1997 = vperm.xlu0 %1996, %v1798
        %v1998 = vpop.permute.xlu0 %1997
        %v2000 = vadd.f32 %v1922, %v1963
        %v2001 = vadd.f32 %v1924, %v1963
        %v2002 = vadd.f32 %v1926, %v1968
        %v2003 = vadd.f32 %v1928, %v1968
        %v2004 = vadd.f32 %v1932, %v1973
        %v2005 = vadd.f32 %v1934, %v1973
        %v2006 = vadd.f32 %v1936, %v1978
        %v2007 = vadd.f32 %v1938, %v1978
        %v2008 = vadd.f32 %v1942, %v1983
        %v2009 = vadd.f32 %v1944, %v1983
        %v2010 = vadd.f32 %v1946, %v1988
        %v2011 = vadd.f32 %v1948, %v1988
        %v2012 = vadd.f32 %v1952, %v1993
        %v2013 = vadd.f32 %v1954, %v1993
        %v2014 = vadd.f32 %v1956, %v1998
        %v2015 = vadd.f32 %v1958, %v1998
        %v2016 = vmax.f32 %v2000, 0.0
        %v2017 = vmax.f32 %v2001, 0.0
        %v2018 = vmax.f32 %v2002, 0.0
        %v2019 = vmax.f32 %v2003, 0.0
        %v2020 = vmax.f32 %v2004, 0.0
        %v2021 = vmax.f32 %v2005, 0.0
        %v2022 = vmax.f32 %v2006, 0.0
        %v2023 = vmax.f32 %v2007, 0.0
        %v2024 = vmax.f32 %v2008, 0.0
        %v2025 = vmax.f32 %v2009, 0.0
        %v2026 = vmax.f32 %v2010, 0.0
        %v2027 = vmax.f32 %v2011, 0.0
        %v2028 = vmax.f32 %v2012, 0.0
        %v2029 = vmax.f32 %v2013, 0.0
        %v2030 = vmax.f32 %v2014, 0.0
        %v2031 = vmax.f32 %v2015, 0.0
        %v2032 = vld [vmem:[%s5 + $0x60] sm:$0xf]
        %v2033 = vld [vmem:[%s5 + $0x68] sm:$0xf]
        %v2034 = vld [vmem:[%s4 + $0x100] sm:$0xff]
        %v2035 = vld [vmem:[%s4 + $0x108] sm:$0xff]
        %v2036 = vpack.c.bf16 %v2018, %v2016
        %v2037 = vpack.c.bf16 %v2019, %v2017
        %v2038 = vpack.c.bf16 %v2022, %v2020
        %v2039 = vpack.c.bf16 %v2023, %v2021
        %v2040 = vpack.c.bf16 %v2026, %v2024
        %v2041 = vpack.c.bf16 %v2027, %v2025
        %v2042 = vpack.c.bf16 %v2030, %v2028
        %v2043 = vpack.c.bf16 %v2031, %v2029
        %v2045 = vsel %vm1083, %v2033, 0
        %2047 = vmatprep.subr.bf16.mxu0 %v1758
        %2048 = vmatpush1.bf16.msra.mxu0 %v1757
        %2049 = vmatprep.subr.bf16.mxu0 %v1760
        %2050 = vmatpush1.bf16.msra.mxu0 %v1759
        %2051 = vmatprep.subr.bf16.mxu0 0
        %2052 = vmatpush1.bf16.msra.mxu0 0
        %2053 = vmatprep.subr.bf16.mxu0 0
        %2054 = vmatpush1.bf16.msra.mxu0 0
        %2055 = vmatprep.subr.bf16.mxu0 0
        %2056 = vmatpush1.bf16.msra.mxu0 0
        %2057 = vmatprep.subr.bf16.mxu0 0
        %2058 = vmatpush1.bf16.msra.mxu0 0
        %2059 = vmatprep.subr.bf16.mxu0 0
        %2060 = vmatpush1.bf16.msra.mxu0 0
        %2061 = vmatprep.subr.bf16.mxu0 0
        %2062 = vmatpush1.bf16.msra.mxu0 0
        %2063 = vmatprep.subr.bf16.mxu0 0
        %2064 = vmatpush1.bf16.msra.mxu0 0
        %2065 = vmatprep.subr.bf16.mxu0 0
        %2066 = vmatpush1.bf16.msra.mxu0 0
        %2067 = vmatprep.subr.bf16.mxu0 0
        %2068 = vmatpush1.bf16.msra.mxu0 0
        %2069 = vmatprep.subr.bf16.mxu0 0
        %2070 = vmatpush1.bf16.msra.mxu0 0
        %2071 = vmatprep.subr.bf16.mxu0 0
        %2072 = vmatpush1.bf16.msra.mxu0 0
        %2073 = vmatprep.subr.bf16.mxu0 0
        %2074 = vmatpush1.bf16.msra.mxu0 0
        %2075 = vmatprep.subr.bf16.mxu0 0
        %2076 = vmatpush1.bf16.msra.mxu0 0
        %2077 = vmatprep.subr.bf16.mxu0 0
        %2078 = vmatpush1.bf16.msra.mxu0 0
        %2079 = vmatprep.mubr.bf16.mxu0 0
        %2080 = vmatmul.mubr.bf16.gmra.mrb[0].mxu0 %v2045
        %v2081 = vpop.f32.mrb[0].mxu0
        %v2082 = vadd.f32 0.0, %v2081
        %v2083 = vpop.f32.mrb[0].mxu0
        %v2084 = vadd.f32 0.0, %v2083
        %v2085 = vpop.f32.mrb[0].mxu0
        %v2086 = vpop.f32.mrb[0].mxu0
        %2087 = vdwg.mxu0
        %v2089 = vsel %vm981, %v2032, 0
        %2091 = vmatprep.subr.bf16.mxu0 %v2037
        %2092 = vmatpush1.bf16.msra.mxu0 %v2036
        %2093 = vmatprep.subr.bf16.mxu0 %v2039
        %2094 = vmatpush1.bf16.msra.mxu0 %v2038
        %2095 = vmatprep.subr.bf16.mxu0 %v2041
        %2096 = vmatpush1.bf16.msra.mxu0 %v2040
        %2097 = vmatprep.subr.bf16.mxu0 %v2043
        %2098 = vmatpush1.bf16.msra.mxu0 %v2042
        %2099 = vmatprep.subr.bf16.mxu0 0
        %2100 = vmatpush1.bf16.msra.mxu0 0
        %2101 = vmatprep.subr.bf16.mxu0 0
        %2102 = vmatpush1.bf16.msra.mxu0 0
        %2103 = vmatprep.subr.bf16.mxu0 0
        %2104 = vmatpush1.bf16.msra.mxu0 0
        %2105 = vmatprep.subr.bf16.mxu0 0
        %2106 = vmatpush1.bf16.msra.mxu0 0
        %2107 = vmatprep.subr.bf16.mxu0 0
        %2108 = vmatpush1.bf16.msra.mxu0 0
        %2109 = vmatprep.subr.bf16.mxu0 0
        %2110 = vmatpush1.bf16.msra.mxu0 0
        %2111 = vmatprep.subr.bf16.mxu0 0
        %2112 = vmatpush1.bf16.msra.mxu0 0
        %2113 = vmatprep.subr.bf16.mxu0 0
        %2114 = vmatpush1.bf16.msra.mxu0 0
        %2115 = vmatprep.subr.bf16.mxu0 0
        %2116 = vmatpush1.bf16.msra.mxu0 0
        %2117 = vmatprep.subr.bf16.mxu0 0
        %2118 = vmatpush1.bf16.msra.mxu0 0
        %2119 = vmatprep.subr.bf16.mxu0 0
        %2120 = vmatpush1.bf16.msra.mxu0 0
        %2121 = vmatprep.subr.bf16.mxu0 0
        %2122 = vmatpush1.bf16.msra.mxu0 0
        %2123 = vmatprep.mubr.bf16.mxu0 0
        %2124 = vmatmul.mubr.bf16.gmra.mrb[0].mxu0 %v2089
        %v2125 = vpop.f32.mrb[0].mxu0
        %v2126 = vadd.f32 %v2082, %v2125
        %v2127 = vpop.f32.mrb[0].mxu0
        %v2128 = vadd.f32 %v2084, %v2127
        %v2129 = vpop.f32.mrb[0].mxu0
        %v2130 = vpop.f32.mrb[0].mxu0
        %2131 = vdwg.mxu0
        %2133 = vset.pattern.permute.xlu0 0
        %2134 = vperm.xlu0 %2133, %v2034
        %v2135 = vpop.permute.xlu0 %2134
        %v2137 = vmul.f32 %v2135, %v1768
        %v2138 = vmul.f32 %v2135, %v1774
        %v2139 = vadd.f32 %v2126, %v2137
        %v2140 = vadd.f32 %v2128, %v2138
        %2142 = vset.pattern.permute.xlu0 0
        %2143 = vperm.xlu0 %2142, %v2035
        %v2144 = vpop.permute.xlu0 %2143
        %v2146 = vadd.f32 %v2139, %v2144
        %v2147 = vadd.f32 %v2140, %v2144
        %vm2148 = vcmp.lt.s32.totalorder %v1728, 3
        %v2149 = vsel %vm2148, 1, 0
        %vm2150 = vcmp.eq.s32.totalorder %v2149, 1
        %v2151 = vsel %vm2150, %v2146, -inf
        %v2152 = vsel %vm2150, %v2147, -inf
        %v2153 = vrot.slane %v2151, 4
        %v2154 = vmax.f32 %v2151, %v2153
        %v2155 = vrot.slane %v2154, 2
        %v2156 = vmax.f32 %v2154, %v2155
        %v2157 = vrot.slane %v2156, 1
        %v2158 = vmax.f32 %v2156, %v2157
        %v2159 = vrot.slane %v2152, 4
        %v2160 = vmax.f32 %v2152, %v2159
        %v2161 = vrot.slane %v2160, 2
        %v2162 = vmax.f32 %v2160, %v2161
        %v2163 = vrot.slane %v2162, 1
        %v2164 = vmax.f32 %v2162, %v2163
        %v2165 = vsub.f32 %v2146, %v2158
        %v2166 = vsub.f32 %v2147, %v2164
        %v2167 = vmul.f32 %v2165, 1.442695
        %v2168 = vpow.pop %v2167
        %v2169 = vmul.f32 %v2166, 1.442695
        %v2170 = vpow.pop %v2169
        %v2171 = vsel %vm2150, %v2168, 0.0
        %v2172 = vsel %vm2150, %v2170, 0.0
        %v2173 = vrot.slane %v2171, 4
        %v2174 = vadd.f32 %v2171, %v2173
        %v2175 = vrot.slane %v2174, 2
        %v2176 = vadd.f32 %v2174, %v2175
        %v2177 = vrot.slane %v2176, 1
        %v2178 = vadd.f32 %v2176, %v2177
        %v2179 = vrot.slane %v2172, 4
        %v2180 = vadd.f32 %v2172, %v2179
        %v2181 = vrot.slane %v2180, 2
        %v2182 = vadd.f32 %v2180, %v2181
        %v2183 = vrot.slane %v2182, 1
        %v2184 = vadd.f32 %v2182, %v2183
        %v2185 = vlog2.pop %v2178
        %v2186 = vmul.f32 %v2185, 0.6931472
        %v2187 = vlog2.pop %v2184
        %v2188 = vmul.f32 %v2187, 0.6931472
        %v2189 = vsub.f32 %v2165, %v2186
        %v2190 = vsub.f32 %v2166, %v2188
        %2191 = vst [vmem:[%s342] sm:$0xff] %v2189
        %2192 = vst [vmem:[%s342 + $0x8] sm:$0xff] %v2190
      $region52: #{seg_net_forward.1} parent=43 // pred_fallthru
        _
      %p2193 = scmp.lt.s32.totalorder %s23, 1
      %s2194 = scalar_select %p2193, %s23, 1
      %p2195 = scmp.lt.s32.totalorder %s24, 1
      %s2196 = scalar_select %p2195, %s24, 1
      %s2197 = smul.addr %s2194, 2
      %s2198 = sadd.s32 %s2196, %s2197
      %s2199 = smul.addr %s2198, 8
      %s2200 = scalar_lea.vmem %s6, %s2199
      %p2201 = scmp.lt.s32.totalorder %s23, 1
      %s2202 = scalar_select %p2201, %s23, 1
      %s2203 = smul.addr %s2202, 2
      %s2204 = smul.addr %s2203, 8
      %s2205 = scalar_lea.vmem %s7, %s2204
      // Predicated region
      $region53: #{seg_net_forward.1} parent=43 // pred_check
        %p2206 = pneg %p189
      $region54: #{seg_net_forward.1} parent=43 // pred_check_branch
        %2208 = sbr.rel (%p2206) target = $region56
      $region55: #{seg_net_forward.1} parent=43 // pred_region
        _
      $region56: #{seg_net_forward.1} parent=43 // pred_fallthru
        _
      // Predicated region
      $region57: #{seg_net_forward.1} parent=43 // pred_check
        %p2209 = pneg %p215
      $region58: #{seg_net_forward.1} parent=43 // pred_check_branch
        %2211 = sbr.rel (%p2209) target = $region60
      $region59: #{seg_net_forward.1} parent=43 // pred_region
        _
      $region60: #{seg_net_forward.1} parent=43 // pred_fallthru
        _
    $region44: #{seg_net_forward.1} parent=5 // pred_fallthru
      _
    %p2212 = scmp.le.s32.totalorder 2, %s14
    // Predicated region
    $region61: #{seg_net_forward.1} parent=5 // pred_check
      %p2213 = pneg %p2212
    $region62: #{seg_net_forward.1} parent=5 // pred_check_branch
      %2215 = sbr.rel (%p2213) target = $region64
    $region63: #{seg_net_forward.1} parent=5 // pred_region
      %s2216 = ssub.s32 %s14, 2
      // Predicated region
      $region65: #{seg_net_forward.1} parent=63 // pred_check
        %p2217 = pneg %p195
      $region66: #{seg_net_forward.1} parent=63 // pred_check_branch
        %2219 = sbr.rel (%p2217) target = $region68
      $region67: #{seg_net_forward.1} parent=63 // pred_region
        %p2220 = scmp.lt.s32.totalorder %s25, 1
        %s2221 = scalar_select %p2220, %s25, 1
        %p2222 = scmp.lt.s32.totalorder %s26, 1
        %s2223 = scalar_select %p2222, %s26, 1
        %s2224 = smul.addr %s2221, 2
        %s2225 = sadd.s32 %s2223, %s2224
        %s2226 = smul.addr %s2225, 8
        %s2227 = scalar_lea.vmem %s6, %s2226
      $region68: #{seg_net_forward.1} parent=63 // pred_fallthru
        _
      // Predicated region
      $region69: #{seg_net_forward.1} parent=63 // pred_check
        %p2228 = pneg %p221
      $region70: #{seg_net_forward.1} parent=63 // pred_check_branch
        %2230 = sbr.rel (%p2228) target = $region72
      $region71: #{seg_net_forward.1} parent=63 // pred_region
        %p2231 = scmp.lt.s32.totalorder %s25, 1
        %s2232 = scalar_select %p2231, %s25, 1
        %s2233 = smul.addr %s2232, 2
        %s2234 = smul.addr %s2233, 8
        %s2235 = scalar_lea.vmem %s7, %s2234
      $region72: #{seg_net_forward.1} parent=63 // pred_fallthru
        _
    $region64: #{seg_net_forward.1} parent=5 // pred_fallthru
      _
  $region6: #{seg_net_forward.1} parent=0 // loop_footer
    %s18 = sadd.s32 1, %s14
  $region7: #{seg_net_forward.1} parent=0 // loop_footer_branch
    %13 = sbr.rel target = $region3
  $region8: #{seg_net_forward.1} parent=0 // loop_exit
    _

</llo_original>
